<compile_context>
chip_gen: v7x
topology: tpu7x:2x2x1
jax: 0.10.0
libtpu: 0.0.40
codegen_flags: <defaults>
</compile_context>

<pallas_src>
import functools

import jax
import jax.numpy as jnp
from jax import lax
from jax.experimental import pallas as pl
from jax.experimental.pallas import tpu as pltpu

EPS = 1e-5


# --------------------------- geometry helpers ------------------------------
def _geometry(F, T, K, S):
    """Static layout geometry shared by prepare_params() and the forward."""
    pad = K // 2
    T1 = (T - 1) // S + 1
    F1 = (F - 1) // S + 1
    q = (K - 1) // S
    # time axis, phase-decomposed: tpad = S*jt + pt, jt in [0, Tqt)
    Tqt = max(T1 + q, -(-(T + 2 * pad) // S))
    R2 = F1 * T1
    R2p = -(-R2 // 128) * 128          # lane-dense (multiple-of-128) output width
    # frequency axis, phase-decomposed: fpad = S*jf + pf, jf in [0, Fq)
    Fq = max(F1 + q, -(-(F + 2 * pad) // S))
    # every stage-2 tap slice [start, start + R2p) must stay inside R1 = S*Fq*T1
    def _max_start(fq):
        return max(((k % S) * fq + k // S) * T1 for k in range(K))
    while _max_start(Fq) + R2p > S * Fq * T1:
        Fq += 1
    R1 = S * Fq * T1
    return dict(pad=pad, T1=T1, F1=F1, Tqt=Tqt, Fq=Fq, R1=R1, R2=R2, R2p=R2p)


def _to_lane1(a, F, T1, pad, Fq, S):
    """(C, F, T1) -> (C, R1) in (p_f, j_f, t1) lane order, zeros on pad lanes."""
    c = a.shape[0]
    buf = jnp.zeros((c, S * Fq, T1), jnp.float32)
    buf = buf.at[:, pad:pad + F, :].set(a)
    return buf.reshape(c, Fq, S, T1).transpose(0, 2, 1, 3).reshape(c, S * Fq * T1)


def prepare_params(params, F, T, K, S):
    """One-time parameter relayout (hoisted out of the per-call forward path)."""
    w1, b1, g1, bt1, w2, b2, g2, bt2 = params
    Cout, Cin = w1.shape[0], w1.shape[1]
    g = _geometry(F, T, K, S)
    pad, T1, Fq, R2, R2p = g["pad"], g["T1"], g["Fq"], g["R2"], g["R2p"]

    # conv1: (Cout, Cin, 1, K) -> (Cout, K*Cin), column order (k, cin)  [bf16]
    w1f = w1[:, :, 0, :].transpose(0, 2, 1).reshape(Cout, K * Cin)
    w1f = w1f.astype(jnp.bfloat16)
    b1m = b1.reshape(Cout, 1).astype(jnp.float32)
    # LN1 affine + mask in the (p_f, j_f, t1) lane order (zeros on pad lanes)
    g1_l = _to_lane1(g1, F, T1, pad, Fq, S).astype(jnp.bfloat16)
    bt1_l = _to_lane1(bt1, F, T1, pad, Fq, S).astype(jnp.bfloat16)
    mask1 = _to_lane1(jnp.ones((1, F, T1), jnp.float32), F, T1, pad, Fq, S)
    # conv2: (Cout, Cout, K, 1) -> (Cout, K*Cout), column order (k, cin)  [f32]
    w2f = w2[:, :, :, 0].transpose(0, 2, 1).reshape(Cout, K * Cout)
    w2f = w2f.astype(jnp.float32)
    b2m = b2.reshape(Cout, 1).astype(jnp.float32)
    # LN2 affine, lane-padded to R2p with zeros (pad lanes -> exact zero output)
    g2p = jnp.pad(g2.reshape(Cout, R2), ((0, 0), (0, R2p - R2))).astype(jnp.bfloat16)
    bt2p = jnp.pad(bt2.reshape(Cout, R2), ((0, 0), (0, R2p - R2))).astype(jnp.bfloat16)
    return (w1f, b1m, g1_l, bt1_l, mask1, w2f, b2m, g2p, bt2p)


# ------------------------------ fused kernel -------------------------------
def _fused_block_kernel(slab_ref, w1_ref, b1_ref, g1_ref, bt1_ref, m1_ref,
                        w2_ref, b2_ref, g2_ref, bt2_ref, out_ref,
                        xcol_ref, z1_ref, zcat_ref,
                        *, K, S, Fq, Tqt, T1, R2, R2p, inv_n1, inv_n2):
    """One batch sample: conv1 + LN1 + ReLU + conv2 + LN2 + ReLU, fully fused.

    slab_ref : (1, S*Fq, Cin, S*Tqt) bf16 - x, padded & phase-decomposed in
               frequency ((p_f, j_f) on dim 1) and time ((p_t, j_t) on dim 3).
    xcol_ref : (K*Cin, R1) bf16 scratch - in-kernel im2col (never hits HBM).
    z1_ref   : (Cout, R1) f32 scratch  - relu(LN1(conv1)), zero on pad lanes.
    zcat_ref : (K*Cout, R2p) f32 scratch - sublane-stacked stage-2 taps.
    out_ref  : (1, Cout, R2p) f32 - lanes ordered (f1, t1), lane-padded to 128.
    """
    Cin = slab_ref.shape[2]
    Cout = w1_ref.shape[0]
    SFq = S * Fq

    # ---- stage-1 tap gather: build the im2col in VMEM from the 1x slab ------
    # xcol rows are (tap k, cin); lanes are (PJ=(p_f,j_f), t1), matching the
    # LN1 affine lane order and the stage-2 contiguous tap slices below.
    # TODO(synk): replace the unrolled per-PJ loop with a fori_loop / coarser
    # chunks for production-sized S*Fq.
    for pj in range(SFq):
        plane = slab_ref[0, pj]                          # (Cin, S*Tqt) bf16
        for k in range(K):
            off = (k % S) * Tqt + k // S                 # time phase + shift
            xcol_ref[pl.ds(k * Cin, Cin), pl.ds(pj * T1, T1)] = (
                plane[:, off:off + T1])

    # ---- stage 1: ONE (Cout, K*Cin) @ (K*Cin, R1) bf16 matmul, f32 acc ------
    y1 = jnp.dot(w1_ref[...], xcol_ref[...],
                 preferred_element_type=jnp.float32) + b1_ref[...]   # (Cout,R1)

    # Masked one-pass LayerNorm statistics over the real (non-pad) lanes.
    ym = y1 * m1_ref[...]
    mu1 = jnp.sum(ym) * inv_n1
    var1 = jnp.sum(ym * y1) * inv_n1 - mu1 * mu1
    rstd1 = lax.rsqrt(var1 + EPS)
    # gamma/beta are zero on pad lanes -> z1 is exactly 0 there, which doubles
    # as the zero padding needed by the stage-2 (K,1) convolution.
    z1_ref[...] = jnp.maximum(
        (y1 - mu1) * rstd1 * g1_ref[...].astype(jnp.float32)
        + bt1_ref[...].astype(jnp.float32), 0.0)

    # ---- stage 2: sublane-stack the K frequency taps (contiguous lane slices
    #      of the phase-decomposed z1) and do ONE folded matmul ---------------
    for k in range(K):
        off2 = ((k % S) * Fq + k // S) * T1
        zcat_ref[pl.ds(k * Cout, Cout), :] = z1_ref[:, pl.ds(off2, R2p)]

    y2 = jnp.dot(w2_ref[...], zcat_ref[...],
                 preferred_element_type=jnp.float32) + b2_ref[...]   # (Cout,R2p)

    y2r = y2[:, :R2]                    # exclude lane padding from LN2 stats
    mu2 = jnp.sum(y2r) * inv_n2
    var2 = jnp.sum(y2r * y2r) * inv_n2 - mu2 * mu2
    rstd2 = lax.rsqrt(var2 + EPS)
    out_ref[0] = jnp.maximum(
        (y2 - mu2) * rstd2 * g2_ref[...].astype(jnp.float32)
        + bt2_ref[...].astype(jnp.float32), 0.0)


# -------------------------------- wrapper ----------------------------------
def spatially_separable_conv_block(x, prepped, K, S):
    """x: (N, Cin, F, T) float32 NCHW.  Returns (N, Cout, F1, T1) float32."""
    w1f, b1m, g1_l, bt1_l, mask1, w2f, b2m, g2p, bt2p = prepped
    N, Cin, F, T = x.shape
    Cout = w1f.shape[0]
    g = _geometry(F, T, K, S)
    pad, T1, F1 = g["pad"], g["T1"], g["F1"]
    Tqt, Fq, R1, R2, R2p = g["Tqt"], g["Fq"], g["R1"], g["R2"], g["R2p"]

    # ---- x slab: pad once, phase-decompose frequency and time, 1x bytes -----
    buf = jnp.zeros((N, Cin, S * Fq, S * Tqt), jnp.float32)
    buf = buf.at[:, :, pad:pad + F, pad:pad + T].set(x)
    buf = buf.reshape(N, Cin, Fq, S, Tqt, S)          # (N,Cin,j_f,p_f,j_t,p_t)
    buf = buf.transpose(0, 3, 2, 1, 5, 4)             # (N,p_f,j_f,Cin,p_t,j_t)
    slab = buf.reshape(N, S * Fq, Cin, S * Tqt).astype(jnp.bfloat16)

    kernel = functools.partial(
        _fused_block_kernel, K=K, S=S, Fq=Fq, Tqt=Tqt, T1=T1, R2=R2, R2p=R2p,
        inv_n1=1.0 / float(Cout * F * T1), inv_n2=1.0 / float(Cout * F1 * T1))

    # Advisory cost hint for XLA scheduling around the custom call.
    flops = 2 * N * (Cout * (K * Cin) * R1 + Cout * (K * Cout) * R2p)
    bytes_accessed = (slab.size * 2 + N * Cout * R2p * 4
                      + sum(int(a.size) * a.dtype.itemsize for a in prepped))
    cost = pl.CostEstimate(flops=flops, transcendentals=2 * N,
                           bytes_accessed=int(bytes_accessed))

    # VMEM budget: double-buffered per-sample blocks + invariant operands +
    # scratch, with slack (v6e/v5e have 128 MiB physical, v7x 64 MiB).
    per_sample = (S * Fq) * Cin * (S * Tqt) * 2 + Cout * R2p * 4
    invariant = sum(int(a.size) * a.dtype.itemsize for a in prepped)
    scratch = K * Cin * R1 * 2 + Cout * R1 * 4 + K * Cout * R2p * 4
    vmem_limit = int(min(100 * 2**20,
                         max(32 * 2**20,
                             2 * per_sample + 2 * invariant + scratch + (8 << 20))))

    # TODO(synk): single-buffer the grid-invariant operands
    # (pipeline_mode=pl.Buffered(1)) once validated; frees ~half their VMEM on v7x.
    # TODO(synk): for production-sized F*T1 (e.g. 80x1500) add an "arbitrary"
    # R-tile grid axis with running LN sum/sumsq scratch (v7x 64 MiB VMEM), and
    # batch Nb samples per grid step to fill the 128-lane axis / amortize the
    # ~0.35 us per-step overhead.
    out = pl.pallas_call(
        kernel,
        out_shape=jax.ShapeDtypeStruct((N, Cout, R2p), jnp.float32),
        grid_spec=pltpu.PrefetchScalarGridSpec(
            num_scalar_prefetch=0,
            grid=(N,),
            in_specs=[
                pl.BlockSpec((1, S * Fq, Cin, S * Tqt), lambda n: (n, 0, 0, 0)),
                pl.BlockSpec((Cout, K * Cin), lambda n: (0, 0)),
                pl.BlockSpec((Cout, 1), lambda n: (0, 0)),
                pl.BlockSpec((Cout, R1), lambda n: (0, 0)),
                pl.BlockSpec((Cout, R1), lambda n: (0, 0)),
                pl.BlockSpec((1, R1), lambda n: (0, 0)),
                pl.BlockSpec((Cout, K * Cout), lambda n: (0, 0)),
                pl.BlockSpec((Cout, 1), lambda n: (0, 0)),
                pl.BlockSpec((Cout, R2p), lambda n: (0, 0)),
                pl.BlockSpec((Cout, R2p), lambda n: (0, 0)),
            ],
            out_specs=pl.BlockSpec((1, Cout, R2p), lambda n: (n, 0, 0)),
            scratch_shapes=[
                pltpu.VMEM((K * Cin, R1), jnp.bfloat16),   # in-kernel im2col
                pltpu.VMEM((Cout, R1), jnp.float32),       # z1 = relu(LN1(conv1))
                pltpu.VMEM((K * Cout, R2p), jnp.float32),  # stacked stage-2 taps
            ]),
        compiler_params=pltpu.CompilerParams(
            dimension_semantics=("parallel",),
            vmem_limit_bytes=vmem_limit),
        cost_estimate=cost,
    )(slab, w1f, b1m, g1_l, bt1_l, mask1, w2f, b2m, g2p, bt2p)

    # Kernel output lanes are already (f1, t1) row-major; drop the lane padding.
    return out[:, :, :R2].reshape(N, Cout, F1, T1)


# ---------------------------- pure-JAX reference ---------------------------
def _layer_norm_ref(y, gamma, beta):
    mu = jnp.mean(y, axis=(1, 2, 3), keepdims=True)
    var = jnp.mean((y - mu) ** 2, axis=(1, 2, 3), keepdims=True)
    return (y - mu) * lax.rsqrt(var + EPS) * gamma[None] + beta[None]


def reference_block(x, params, K, S):
    w1, b1, g1, bt1, w2, b2, g2, bt2 = params
    pad = K // 2
    dn = ("NCHW", "OIHW", "NCHW")
    y = lax.conv_general_dilated(
        x, w1, window_strides=(1, S), padding=[(0, 0), (pad, pad)],
        dimension_numbers=dn, precision=lax.Precision.HIGHEST)
    y = y + b1[None, :, None, None]
    y = jnp.maximum(_layer_norm_ref(y, g1, bt1), 0.0)
    y = lax.conv_general_dilated(
        y, w2, window_strides=(S, 1), padding=[(pad, pad), (0, 0)],
        dimension_numbers=dn, precision=lax.Precision.HIGHEST)
    y = y + b2[None, :, None, None]
    y = jnp.maximum(_layer_norm_ref(y, g2, bt2), 0.0)
    return y


# ---------------------------------- main -----------------------------------
if __name__ == "__main__":
    N, Cin, Cout = 2, 4, 8
    K, S = 3, 2
    F, T = 16, 16
    T1 = (T - 1) // S + 1
    F1 = (F - 1) // S + 1

    key = jax.random.PRNGKey(0)
    ks = jax.random.split(key, 9)
    x = jax.random.normal(ks[0], (N, Cin, F, T), jnp.float32)

    w1 = 0.1 * jax.random.normal(ks[1], (Cout, Cin, 1, K), jnp.float32)
    b1 = 0.1 * jax.random.normal(ks[2], (Cout,), jnp.float32)
    g1 = 1.0 + 0.1 * jax.random.normal(ks[3], (Cout, F, T1), jnp.float32)
    bt1 = 0.1 * jax.random.normal(ks[4], (Cout, F, T1), jnp.float32)
    w2 = 0.1 * jax.random.normal(ks[5], (Cout, Cout, K, 1), jnp.float32)
    b2 = 0.1 * jax.random.normal(ks[6], (Cout,), jnp.float32)
    g2 = 1.0 + 0.1 * jax.random.normal(ks[7], (Cout, F1, T1), jnp.float32)
    bt2 = 0.1 * jax.random.normal(ks[8], (Cout, F1, T1), jnp.float32)

    params = (w1, b1, g1, bt1, w2, b2, g2, bt2)
    prepped = prepare_params(params, F, T, K, S)        # one-time relayout

    fwd = jax.jit(functools.partial(spatially_separable_conv_block, K=K, S=S))
    out = fwd(x, prepped)
    jax.block_until_ready(out)

    ref = reference_block(x, params, K, S)
    assert out.shape == (N, Cout, F1, T1), out.shape
    err = float(jnp.max(jnp.abs(out - ref)))
    # bf16 activations/weights/LN-affine plus default MXU precision vs an f32
    # HIGHEST-precision reference through two conv+LayerNorm stages: worst-case
    # elementwise error stays well inside 5e-2.
    assert jnp.allclose(out, ref, atol=5e-2, rtol=5e-2), err

    print("KERNEL_OK")
</pallas_src>

<mosaic_0001>
module attributes {stable_mosaic.version = 11 : i64} {
  func.func @_fused_block_kernel(%arg0: i32, %arg1: memref<1x32x4x18xbf16, #tpu.memory_space<vmem>>, %arg2: memref<8x12xbf16, #tpu.memory_space<vmem>>, %arg3: memref<8x1xf32, #tpu.memory_space<vmem>>, %arg4: memref<8x256xbf16, #tpu.memory_space<vmem>>, %arg5: memref<8x256xbf16, #tpu.memory_space<vmem>>, %arg6: memref<1x256xf32, #tpu.memory_space<vmem>>, %arg7: memref<8x24xf32, #tpu.memory_space<vmem>>, %arg8: memref<8x1xf32, #tpu.memory_space<vmem>>, %arg9: memref<8x128xbf16, #tpu.memory_space<vmem>>, %arg10: memref<8x128xbf16, #tpu.memory_space<vmem>>, %arg11: memref<1x8x128xf32, #tpu.memory_space<vmem>>, %arg12: memref<12x256xbf16, #tpu.memory_space<vmem>>, %arg13: memref<8x256xf32, #tpu.memory_space<vmem>>, %arg14: memref<24x128xf32, #tpu.memory_space<vmem>>) attributes {dimension_semantics = [#tpu.dimension_semantics<parallel>], iteration_bounds = array<i64: 2>, scalar_prefetch = 0 : i64, scratch_operands = 3 : i64, tpu.core_type = #tpu.core_type<tc>, window_params = [{transform_indices = @transform_0, window_bounds = array<i64: 1, 32, 4, 18>}, {pipeline_mode = #tpu.pipeline_mode<synchronous>, transform_indices = @transform_1, window_bounds = array<i64: 8, 12>}, {pipeline_mode = #tpu.pipeline_mode<synchronous>, transform_indices = @transform_2, window_bounds = array<i64: 8, 1>}, {pipeline_mode = #tpu.pipeline_mode<synchronous>, transform_indices = @transform_3, window_bounds = array<i64: 8, 256>}, {pipeline_mode = #tpu.pipeline_mode<synchronous>, transform_indices = @transform_4, window_bounds = array<i64: 8, 256>}, {pipeline_mode = #tpu.pipeline_mode<synchronous>, transform_indices = @transform_5, window_bounds = array<i64: 1, 256>}, {pipeline_mode = #tpu.pipeline_mode<synchronous>, transform_indices = @transform_6, window_bounds = array<i64: 8, 24>}, {pipeline_mode = #tpu.pipeline_mode<synchronous>, transform_indices = @transform_7, window_bounds = array<i64: 8, 1>}, {pipeline_mode = #tpu.pipeline_mode<synchronous>, transform_indices = @transform_8, window_bounds = array<i64: 8, 128>}, {pipeline_mode = #tpu.pipeline_mode<synchronous>, transform_indices = @transform_9, window_bounds = array<i64: 8, 128>}, {transform_indices = @transform_10, window_bounds = array<i64: 1, 8, 128>}]} {
    %c0 = arith.constant 0 : index
    %c0_0 = arith.constant 0 : index
    %c0_1 = arith.constant 0 : index
    %c0_2 = arith.constant 0 : index
    %0 = vector.load %arg1[%c0, %c0_0, %c0_1, %c0_2] : memref<1x32x4x18xbf16, #tpu.memory_space<vmem>>, vector<1x1x4x18xbf16>
    %1 = vector.shape_cast %0 : vector<1x1x4x18xbf16> to vector<4x18xbf16>
    %2 = vector.extract_strided_slice %1 {offsets = [0, 0], sizes = [4, 8], strides = [1, 1]} : vector<4x18xbf16> to vector<4x8xbf16>
    %c0_3 = arith.constant 0 : index
    %c0_4 = arith.constant 0 : index
    %3 = vector.load %arg12[%c0_3, %c0_4] : memref<12x256xbf16, #tpu.memory_space<vmem>>, vector<4x8xbf16>
    tpu.vector_store %arg12[%c0_3, %c0_4], %2 {strides = array<i32>} : memref<12x256xbf16, #tpu.memory_space<vmem>>, vector<4x8xbf16>,
    %4 = vector.extract_strided_slice %1 {offsets = [0, 9], sizes = [4, 8], strides = [1, 1]} : vector<4x18xbf16> to vector<4x8xbf16>
    %c4 = arith.constant 4 : index
    %c0_5 = arith.constant 0 : index
    %5 = vector.load %arg12[%c4, %c0_5] : memref<12x256xbf16, #tpu.memory_space<vmem>>, vector<4x8xbf16>
    tpu.vector_store %arg12[%c4, %c0_5], %4 {strides = array<i32>} : memref<12x256xbf16, #tpu.memory_space<vmem>>, vector<4x8xbf16>,
    %6 = vector.extract_strided_slice %1 {offsets = [0, 1], sizes = [4, 8], strides = [1, 1]} : vector<4x18xbf16> to vector<4x8xbf16>
    %c8 = arith.constant 8 : index
    %c0_6 = arith.constant 0 : index
    %7 = vector.load %arg12[%c8, %c0_6] : memref<12x256xbf16, #tpu.memory_space<vmem>>, vector<4x8xbf16>
    tpu.vector_store %arg12[%c8, %c0_6], %6 {strides = array<i32>} : memref<12x256xbf16, #tpu.memory_space<vmem>>, vector<4x8xbf16>,
    %c0_7 = arith.constant 0 : index
    %c1 = arith.constant 1 : index
    %c0_8 = arith.constant 0 : index
    %c0_9 = arith.constant 0 : index
    %8 = vector.load %arg1[%c0_7, %c1, %c0_8, %c0_9] : memref<1x32x4x18xbf16, #tpu.memory_space<vmem>>, vector<1x1x4x18xbf16>
    %9 = vector.shape_cast %8 : vector<1x1x4x18xbf16> to vector<4x18xbf16>
    %10 = vector.extract_strided_slice %9 {offsets = [0, 0], sizes = [4, 8], strides = [1, 1]} : vector<4x18xbf16> to vector<4x8xbf16>
    %c0_10 = arith.constant 0 : index
    %c8_11 = arith.constant 8 : index
    %11 = vector.load %arg12[%c0_10, %c8_11] : memref<12x256xbf16, #tpu.memory_space<vmem>>, vector<4x8xbf16>
    tpu.vector_store %arg12[%c0_10, %c8_11], %10 {strides = array<i32>} : memref<12x256xbf16, #tpu.memory_space<vmem>>, vector<4x8xbf16>,
    %12 = vector.extract_strided_slice %9 {offsets = [0, 9], sizes = [4, 8], strides = [1, 1]} : vector<4x18xbf16> to vector<4x8xbf16>
    %c4_12 = arith.constant 4 : index
    %c8_13 = arith.constant 8 : index
    %13 = vector.load %arg12[%c4_12, %c8_13] : memref<12x256xbf16, #tpu.memory_space<vmem>>, vector<4x8xbf16>
    tpu.vector_store %arg12[%c4_12, %c8_13], %12 {strides = array<i32>} : memref<12x256xbf16, #tpu.memory_space<vmem>>, vector<4x8xbf16>,
    %14 = vector.extract_strided_slice %9 {offsets = [0, 1], sizes = [4, 8], strides = [1, 1]} : vector<4x18xbf16> to vector<4x8xbf16>
    %c8_14 = arith.constant 8 : index
    %c8_15 = arith.constant 8 : index
    %15 = vector.load %arg12[%c8_14, %c8_15] : memref<12x256xbf16, #tpu.memory_space<vmem>>, vector<4x8xbf16>
    tpu.vector_store %arg12[%c8_14, %c8_15], %14 {strides = array<i32>} : memref<12x256xbf16, #tpu.memory_space<vmem>>, vector<4x8xbf16>,
    %c0_16 = arith.constant 0 : index
    %c2 = arith.constant 2 : index
    %c0_17 = arith.constant 0 : index
    %c0_18 = arith.constant 0 : index
    %16 = vector.load %arg1[%c0_16, %c2, %c0_17, %c0_18] : memref<1x32x4x18xbf16, #tpu.memory_space<vmem>>, vector<1x1x4x18xbf16>
    %17 = vector.shape_cast %16 : vector<1x1x4x18xbf16> to vector<4x18xbf16>
    %18 = vector.extract_strided_slice %17 {offsets = [0, 0], sizes = [4, 8], strides = [1, 1]} : vector<4x18xbf16> to vector<4x8xbf16>
    %c0_19 = arith.constant 0 : index
    %c16 = arith.constant 16 : index
    %19 = vector.load %arg12[%c0_19, %c16] : memref<12x256xbf16, #tpu.memory_space<vmem>>, vector<4x8xbf16>
    tpu.vector_store %arg12[%c0_19, %c16], %18 {strides = array<i32>} : memref<12x256xbf16, #tpu.memory_space<vmem>>, vector<4x8xbf16>,
    %20 = vector.extract_strided_slice %17 {offsets = [0, 9], sizes = [4, 8], strides = [1, 1]} : vector<4x18xbf16> to vector<4x8xbf16>
    %c4_20 = arith.constant 4 : index
    %c16_21 = arith.constant 16 : index
    %21 = vector.load %arg12[%c4_20, %c16_21] : memref<12x256xbf16, #tpu.memory_space<vmem>>, vector<4x8xbf16>
    tpu.vector_store %arg12[%c4_20, %c16_21], %20 {strides = array<i32>} : memref<12x256xbf16, #tpu.memory_space<vmem>>, vector<4x8xbf16>,
    %22 = vector.extract_strided_slice %17 {offsets = [0, 1], sizes = [4, 8], strides = [1, 1]} : vector<4x18xbf16> to vector<4x8xbf16>
    %c8_22 = arith.constant 8 : index
    %c16_23 = arith.constant 16 : index
    %23 = vector.load %arg12[%c8_22, %c16_23] : memref<12x256xbf16, #tpu.memory_space<vmem>>, vector<4x8xbf16>
    tpu.vector_store %arg12[%c8_22, %c16_23], %22 {strides = array<i32>} : memref<12x256xbf16, #tpu.memory_space<vmem>>, vector<4x8xbf16>,
    %c0_24 = arith.constant 0 : index
    %c3 = arith.constant 3 : index
    %c0_25 = arith.constant 0 : index
    %c0_26 = arith.constant 0 : index
    %24 = vector.load %arg1[%c0_24, %c3, %c0_25, %c0_26] : memref<1x32x4x18xbf16, #tpu.memory_space<vmem>>, vector<1x1x4x18xbf16>
    %25 = vector.shape_cast %24 : vector<1x1x4x18xbf16> to vector<4x18xbf16>
    %26 = vector.extract_strided_slice %25 {offsets = [0, 0], sizes = [4, 8], strides = [1, 1]} : vector<4x18xbf16> to vector<4x8xbf16>
    %c0_27 = arith.constant 0 : index
    %c24 = arith.constant 24 : index
    %27 = vector.load %arg12[%c0_27, %c24] : memref<12x256xbf16, #tpu.memory_space<vmem>>, vector<4x8xbf16>
    tpu.vector_store %arg12[%c0_27, %c24], %26 {strides = array<i32>} : memref<12x256xbf16, #tpu.memory_space<vmem>>, vector<4x8xbf16>,
    %28 = vector.extract_strided_slice %25 {offsets = [0, 9], sizes = [4, 8], strides = [1, 1]} : vector<4x18xbf16> to vector<4x8xbf16>
    %c4_28 = arith.constant 4 : index
    %c24_29 = arith.constant 24 : index
    %29 = vector.load %arg12[%c4_28, %c24_29] : memref<12x256xbf16, #tpu.memory_space<vmem>>, vector<4x8xbf16>
    tpu.vector_store %arg12[%c4_28, %c24_29], %28 {strides = array<i32>} : memref<12x256xbf16, #tpu.memory_space<vmem>>, vector<4x8xbf16>,
    %30 = vector.extract_strided_slice %25 {offsets = [0, 1], sizes = [4, 8], strides = [1, 1]} : vector<4x18xbf16> to vector<4x8xbf16>
    %c8_30 = arith.constant 8 : index
    %c24_31 = arith.constant 24 : index
    %31 = vector.load %arg12[%c8_30, %c24_31] : memref<12x256xbf16, #tpu.memory_space<vmem>>, vector<4x8xbf16>
    tpu.vector_store %arg12[%c8_30, %c24_31], %30 {strides = array<i32>} : memref<12x256xbf16, #tpu.memory_space<vmem>>, vector<4x8xbf16>,
    %c0_32 = arith.constant 0 : index
    %c4_33 = arith.constant 4 : index
    %c0_34 = arith.constant 0 : index
    %c0_35 = arith.constant 0 : index
    %32 = vector.load %arg1[%c0_32, %c4_33, %c0_34, %c0_35] : memref<1x32x4x18xbf16, #tpu.memory_space<vmem>>, vector<1x1x4x18xbf16>
    %33 = vector.shape_cast %32 : vector<1x1x4x18xbf16> to vector<4x18xbf16>
    %34 = vector.extract_strided_slice %33 {offsets = [0, 0], sizes = [4, 8], strides = [1, 1]} : vector<4x18xbf16> to vector<4x8xbf16>
    %c0_36 = arith.constant 0 : index
    %c32 = arith.constant 32 : index
    %35 = vector.load %arg12[%c0_36, %c32] : memref<12x256xbf16, #tpu.memory_space<vmem>>, vector<4x8xbf16>
    tpu.vector_store %arg12[%c0_36, %c32], %34 {strides = array<i32>} : memref<12x256xbf16, #tpu.memory_space<vmem>>, vector<4x8xbf16>,
    %36 = vector.extract_strided_slice %33 {offsets = [0, 9], sizes = [4, 8], strides = [1, 1]} : vector<4x18xbf16> to vector<4x8xbf16>
    %c4_37 = arith.constant 4 : index
    %c32_38 = arith.constant 32 : index
    %37 = vector.load %arg12[%c4_37, %c32_38] : memref<12x256xbf16, #tpu.memory_space<vmem>>, vector<4x8xbf16>
    tpu.vector_store %arg12[%c4_37, %c32_38], %36 {strides = array<i32>} : memref<12x256xbf16, #tpu.memory_space<vmem>>, vector<4x8xbf16>,
    %38 = vector.extract_strided_slice %33 {offsets = [0, 1], sizes = [4, 8], strides = [1, 1]} : vector<4x18xbf16> to vector<4x8xbf16>
    %c8_39 = arith.constant 8 : index
    %c32_40 = arith.constant 32 : index
    %39 = vector.load %arg12[%c8_39, %c32_40] : memref<12x256xbf16, #tpu.memory_space<vmem>>, vector<4x8xbf16>
    tpu.vector_store %arg12[%c8_39, %c32_40], %38 {strides = array<i32>} : memref<12x256xbf16, #tpu.memory_space<vmem>>, vector<4x8xbf16>,
    %c0_41 = arith.constant 0 : index
    %c5 = arith.constant 5 : index
    %c0_42 = arith.constant 0 : index
    %c0_43 = arith.constant 0 : index
    %40 = vector.load %arg1[%c0_41, %c5, %c0_42, %c0_43] : memref<1x32x4x18xbf16, #tpu.memory_space<vmem>>, vector<1x1x4x18xbf16>
    %41 = vector.shape_cast %40 : vector<1x1x4x18xbf16> to vector<4x18xbf16>
    %42 = vector.extract_strided_slice %41 {offsets = [0, 0], sizes = [4, 8], strides = [1, 1]} : vector<4x18xbf16> to vector<4x8xbf16>
    %c0_44 = arith.constant 0 : index
    %c40 = arith.constant 40 : index
    %43 = vector.load %arg12[%c0_44, %c40] : memref<12x256xbf16, #tpu.memory_space<vmem>>, vector<4x8xbf16>
    tpu.vector_store %arg12[%c0_44, %c40], %42 {strides = array<i32>} : memref<12x256xbf16, #tpu.memory_space<vmem>>, vector<4x8xbf16>,
    %44 = vector.extract_strided_slice %41 {offsets = [0, 9], sizes = [4, 8], strides = [1, 1]} : vector<4x18xbf16> to vector<4x8xbf16>
    %c4_45 = arith.constant 4 : index
    %c40_46 = arith.constant 40 : index
    %45 = vector.load %arg12[%c4_45, %c40_46] : memref<12x256xbf16, #tpu.memory_space<vmem>>, vector<4x8xbf16>
    tpu.vector_store %arg12[%c4_45, %c40_46], %44 {strides = array<i32>} : memref<12x256xbf16, #tpu.memory_space<vmem>>, vector<4x8xbf16>,
    %46 = vector.extract_strided_slice %41 {offsets = [0, 1], sizes = [4, 8], strides = [1, 1]} : vector<4x18xbf16> to vector<4x8xbf16>
    %c8_47 = arith.constant 8 : index
    %c40_48 = arith.constant 40 : index
    %47 = vector.load %arg12[%c8_47, %c40_48] : memref<12x256xbf16, #tpu.memory_space<vmem>>, vector<4x8xbf16>
    tpu.vector_store %arg12[%c8_47, %c40_48], %46 {strides = array<i32>} : memref<12x256xbf16, #tpu.memory_space<vmem>>, vector<4x8xbf16>,
    %c0_49 = arith.constant 0 : index
    %c6 = arith.constant 6 : index
    %c0_50 = arith.constant 0 : index
    %c0_51 = arith.constant 0 : index
    %48 = vector.load %arg1[%c0_49, %c6, %c0_50, %c0_51] : memref<1x32x4x18xbf16, #tpu.memory_space<vmem>>, vector<1x1x4x18xbf16>
    %49 = vector.shape_cast %48 : vector<1x1x4x18xbf16> to vector<4x18xbf16>
    %50 = vector.extract_strided_slice %49 {offsets = [0, 0], sizes = [4, 8], strides = [1, 1]} : vector<4x18xbf16> to vector<4x8xbf16>
    %c0_52 = arith.constant 0 : index
    %c48 = arith.constant 48 : index
    %51 = vector.load %arg12[%c0_52, %c48] : memref<12x256xbf16, #tpu.memory_space<vmem>>, vector<4x8xbf16>
    tpu.vector_store %arg12[%c0_52, %c48], %50 {strides = array<i32>} : memref<12x256xbf16, #tpu.memory_space<vmem>>, vector<4x8xbf16>,
    %52 = vector.extract_strided_slice %49 {offsets = [0, 9], sizes = [4, 8], strides = [1, 1]} : vector<4x18xbf16> to vector<4x8xbf16>
    %c4_53 = arith.constant 4 : index
    %c48_54 = arith.constant 48 : index
    %53 = vector.load %arg12[%c4_53, %c48_54] : memref<12x256xbf16, #tpu.memory_space<vmem>>, vector<4x8xbf16>
    tpu.vector_store %arg12[%c4_53, %c48_54], %52 {strides = array<i32>} : memref<12x256xbf16, #tpu.memory_space<vmem>>, vector<4x8xbf16>,
    %54 = vector.extract_strided_slice %49 {offsets = [0, 1], sizes = [4, 8], strides = [1, 1]} : vector<4x18xbf16> to vector<4x8xbf16>
    %c8_55 = arith.constant 8 : index
    %c48_56 = arith.constant 48 : index
    %55 = vector.load %arg12[%c8_55, %c48_56] : memref<12x256xbf16, #tpu.memory_space<vmem>>, vector<4x8xbf16>
    tpu.vector_store %arg12[%c8_55, %c48_56], %54 {strides = array<i32>} : memref<12x256xbf16, #tpu.memory_space<vmem>>, vector<4x8xbf16>,
    %c0_57 = arith.constant 0 : index
    %c7 = arith.constant 7 : index
    %c0_58 = arith.constant 0 : index
    %c0_59 = arith.constant 0 : index
    %56 = vector.load %arg1[%c0_57, %c7, %c0_58, %c0_59] : memref<1x32x4x18xbf16, #tpu.memory_space<vmem>>, vector<1x1x4x18xbf16>
    %57 = vector.shape_cast %56 : vector<1x1x4x18xbf16> to vector<4x18xbf16>
    %58 = vector.extract_strided_slice %57 {offsets = [0, 0], sizes = [4, 8], strides = [1, 1]} : vector<4x18xbf16> to vector<4x8xbf16>
    %c0_60 = arith.constant 0 : index
    %c56 = arith.constant 56 : index
    %59 = vector.load %arg12[%c0_60, %c56] : memref<12x256xbf16, #tpu.memory_space<vmem>>, vector<4x8xbf16>
    tpu.vector_store %arg12[%c0_60, %c56], %58 {strides = array<i32>} : memref<12x256xbf16, #tpu.memory_space<vmem>>, vector<4x8xbf16>,
    %60 = vector.extract_strided_slice %57 {offsets = [0, 9], sizes = [4, 8], strides = [1, 1]} : vector<4x18xbf16> to vector<4x8xbf16>
    %c4_61 = arith.constant 4 : index
    %c56_62 = arith.constant 56 : index
    %61 = vector.load %arg12[%c4_61, %c56_62] : memref<12x256xbf16, #tpu.memory_space<vmem>>, vector<4x8xbf16>
    tpu.vector_store %arg12[%c4_61, %c56_62], %60 {strides = array<i32>} : memref<12x256xbf16, #tpu.memory_space<vmem>>, vector<4x8xbf16>,
    %62 = vector.extract_strided_slice %57 {offsets = [0, 1], sizes = [4, 8], strides = [1, 1]} : vector<4x18xbf16> to vector<4x8xbf16>
    %c8_63 = arith.constant 8 : index
    %c56_64 = arith.constant 56 : index
    %63 = vector.load %arg12[%c8_63, %c56_64] : memref<12x256xbf16, #tpu.memory_space<vmem>>, vector<4x8xbf16>
    tpu.vector_store %arg12[%c8_63, %c56_64], %62 {strides = array<i32>} : memref<12x256xbf16, #tpu.memory_space<vmem>>, vector<4x8xbf16>,
    %c0_65 = arith.constant 0 : index
    %c8_66 = arith.constant 8 : index
    %c0_67 = arith.constant 0 : index
    %c0_68 = arith.constant 0 : index
    %64 = vector.load %arg1[%c0_65, %c8_66, %c0_67, %c0_68] : memref<1x32x4x18xbf16, #tpu.memory_space<vmem>>, vector<1x1x4x18xbf16>
    %65 = vector.shape_cast %64 : vector<1x1x4x18xbf16> to vector<4x18xbf16>
    %66 = vector.extract_strided_slice %65 {offsets = [0, 0], sizes = [4, 8], strides = [1, 1]} : vector<4x18xbf16> to vector<4x8xbf16>
    %c0_69 = arith.constant 0 : index
    %c64 = arith.constant 64 : index
    %67 = vector.load %arg12[%c0_69, %c64] : memref<12x256xbf16, #tpu.memory_space<vmem>>, vector<4x8xbf16>
    tpu.vector_store %arg12[%c0_69, %c64], %66 {strides = array<i32>} : memref<12x256xbf16, #tpu.memory_space<vmem>>, vector<4x8xbf16>,
    %68 = vector.extract_strided_slice %65 {offsets = [0, 9], sizes = [4, 8], strides = [1, 1]} : vector<4x18xbf16> to vector<4x8xbf16>
    %c4_70 = arith.constant 4 : index
    %c64_71 = arith.constant 64 : index
    %69 = vector.load %arg12[%c4_70, %c64_71] : memref<12x256xbf16, #tpu.memory_space<vmem>>, vector<4x8xbf16>
    tpu.vector_store %arg12[%c4_70, %c64_71], %68 {strides = array<i32>} : memref<12x256xbf16, #tpu.memory_space<vmem>>, vector<4x8xbf16>,
    %70 = vector.extract_strided_slice %65 {offsets = [0, 1], sizes = [4, 8], strides = [1, 1]} : vector<4x18xbf16> to vector<4x8xbf16>
    %c8_72 = arith.constant 8 : index
    %c64_73 = arith.constant 64 : index
    %71 = vector.load %arg12[%c8_72, %c64_73] : memref<12x256xbf16, #tpu.memory_space<vmem>>, vector<4x8xbf16>
    tpu.vector_store %arg12[%c8_72, %c64_73], %70 {strides = array<i32>} : memref<12x256xbf16, #tpu.memory_space<vmem>>, vector<4x8xbf16>,
    %c0_74 = arith.constant 0 : index
    %c9 = arith.constant 9 : index
    %c0_75 = arith.constant 0 : index
    %c0_76 = arith.constant 0 : index
    %72 = vector.load %arg1[%c0_74, %c9, %c0_75, %c0_76] : memref<1x32x4x18xbf16, #tpu.memory_space<vmem>>, vector<1x1x4x18xbf16>
    %73 = vector.shape_cast %72 : vector<1x1x4x18xbf16> to vector<4x18xbf16>
    %74 = vector.extract_strided_slice %73 {offsets = [0, 0], sizes = [4, 8], strides = [1, 1]} : vector<4x18xbf16> to vector<4x8xbf16>
    %c0_77 = arith.constant 0 : index
    %c72 = arith.constant 72 : index
    %75 = vector.load %arg12[%c0_77, %c72] : memref<12x256xbf16, #tpu.memory_space<vmem>>, vector<4x8xbf16>
    tpu.vector_store %arg12[%c0_77, %c72], %74 {strides = array<i32>} : memref<12x256xbf16, #tpu.memory_space<vmem>>, vector<4x8xbf16>,
    %76 = vector.extract_strided_slice %73 {offsets = [0, 9], sizes = [4, 8], strides = [1, 1]} : vector<4x18xbf16> to vector<4x8xbf16>
    %c4_78 = arith.constant 4 : index
    %c72_79 = arith.constant 72 : index
    %77 = vector.load %arg12[%c4_78, %c72_79] : memref<12x256xbf16, #tpu.memory_space<vmem>>, vector<4x8xbf16>
    tpu.vector_store %arg12[%c4_78, %c72_79], %76 {strides = array<i32>} : memref<12x256xbf16, #tpu.memory_space<vmem>>, vector<4x8xbf16>,
    %78 = vector.extract_strided_slice %73 {offsets = [0, 1], sizes = [4, 8], strides = [1, 1]} : vector<4x18xbf16> to vector<4x8xbf16>
    %c8_80 = arith.constant 8 : index
    %c72_81 = arith.constant 72 : index
    %79 = vector.load %arg12[%c8_80, %c72_81] : memref<12x256xbf16, #tpu.memory_space<vmem>>, vector<4x8xbf16>
    tpu.vector_store %arg12[%c8_80, %c72_81], %78 {strides = array<i32>} : memref<12x256xbf16, #tpu.memory_space<vmem>>, vector<4x8xbf16>,
    %c0_82 = arith.constant 0 : index
    %c10 = arith.constant 10 : index
    %c0_83 = arith.constant 0 : index
    %c0_84 = arith.constant 0 : index
    %80 = vector.load %arg1[%c0_82, %c10, %c0_83, %c0_84] : memref<1x32x4x18xbf16, #tpu.memory_space<vmem>>, vector<1x1x4x18xbf16>
    %81 = vector.shape_cast %80 : vector<1x1x4x18xbf16> to vector<4x18xbf16>
    %82 = vector.extract_strided_slice %81 {offsets = [0, 0], sizes = [4, 8], strides = [1, 1]} : vector<4x18xbf16> to vector<4x8xbf16>
    %c0_85 = arith.constant 0 : index
    %c80 = arith.constant 80 : index
    %83 = vector.load %arg12[%c0_85, %c80] : memref<12x256xbf16, #tpu.memory_space<vmem>>, vector<4x8xbf16>
    tpu.vector_store %arg12[%c0_85, %c80], %82 {strides = array<i32>} : memref<12x256xbf16, #tpu.memory_space<vmem>>, vector<4x8xbf16>,
    %84 = vector.extract_strided_slice %81 {offsets = [0, 9], sizes = [4, 8], strides = [1, 1]} : vector<4x18xbf16> to vector<4x8xbf16>
    %c4_86 = arith.constant 4 : index
    %c80_87 = arith.constant 80 : index
    %85 = vector.load %arg12[%c4_86, %c80_87] : memref<12x256xbf16, #tpu.memory_space<vmem>>, vector<4x8xbf16>
    tpu.vector_store %arg12[%c4_86, %c80_87], %84 {strides = array<i32>} : memref<12x256xbf16, #tpu.memory_space<vmem>>, vector<4x8xbf16>,
    %86 = vector.extract_strided_slice %81 {offsets = [0, 1], sizes = [4, 8], strides = [1, 1]} : vector<4x18xbf16> to vector<4x8xbf16>
    %c8_88 = arith.constant 8 : index
    %c80_89 = arith.constant 80 : index
    %87 = vector.load %arg12[%c8_88, %c80_89] : memref<12x256xbf16, #tpu.memory_space<vmem>>, vector<4x8xbf16>
    tpu.vector_store %arg12[%c8_88, %c80_89], %86 {strides = array<i32>} : memref<12x256xbf16, #tpu.memory_space<vmem>>, vector<4x8xbf16>,
    %c0_90 = arith.constant 0 : index
    %c11 = arith.constant 11 : index
    %c0_91 = arith.constant 0 : index
    %c0_92 = arith.constant 0 : index
    %88 = vector.load %arg1[%c0_90, %c11, %c0_91, %c0_92] : memref<1x32x4x18xbf16, #tpu.memory_space<vmem>>, vector<1x1x4x18xbf16>
    %89 = vector.shape_cast %88 : vector<1x1x4x18xbf16> to vector<4x18xbf16>
    %90 = vector.extract_strided_slice %89 {offsets = [0, 0], sizes = [4, 8], strides = [1, 1]} : vector<4x18xbf16> to vector<4x8xbf16>
    %c0_93 = arith.constant 0 : index
    %c88 = arith.constant 88 : index
    %91 = vector.load %arg12[%c0_93, %c88] : memref<12x256xbf16, #tpu.memory_space<vmem>>, vector<4x8xbf16>
    tpu.vector_store %arg12[%c0_93, %c88], %90 {strides = array<i32>} : memref<12x256xbf16, #tpu.memory_space<vmem>>, vector<4x8xbf16>,
    %92 = vector.extract_strided_slice %89 {offsets = [0, 9], sizes = [4, 8], strides = [1, 1]} : vector<4x18xbf16> to vector<4x8xbf16>
    %c4_94 = arith.constant 4 : index
    %c88_95 = arith.constant 88 : index
    %93 = vector.load %arg12[%c4_94, %c88_95] : memref<12x256xbf16, #tpu.memory_space<vmem>>, vector<4x8xbf16>
    tpu.vector_store %arg12[%c4_94, %c88_95], %92 {strides = array<i32>} : memref<12x256xbf16, #tpu.memory_space<vmem>>, vector<4x8xbf16>,
    %94 = vector.extract_strided_slice %89 {offsets = [0, 1], sizes = [4, 8], strides = [1, 1]} : vector<4x18xbf16> to vector<4x8xbf16>
    %c8_96 = arith.constant 8 : index
    %c88_97 = arith.constant 88 : index
    %95 = vector.load %arg12[%c8_96, %c88_97] : memref<12x256xbf16, #tpu.memory_space<vmem>>, vector<4x8xbf16>
    tpu.vector_store %arg12[%c8_96, %c88_97], %94 {strides = array<i32>} : memref<12x256xbf16, #tpu.memory_space<vmem>>, vector<4x8xbf16>,
    %c0_98 = arith.constant 0 : index
    %c12 = arith.constant 12 : index
    %c0_99 = arith.constant 0 : index
    %c0_100 = arith.constant 0 : index
    %96 = vector.load %arg1[%c0_98, %c12, %c0_99, %c0_100] : memref<1x32x4x18xbf16, #tpu.memory_space<vmem>>, vector<1x1x4x18xbf16>
    %97 = vector.shape_cast %96 : vector<1x1x4x18xbf16> to vector<4x18xbf16>
    %98 = vector.extract_strided_slice %97 {offsets = [0, 0], sizes = [4, 8], strides = [1, 1]} : vector<4x18xbf16> to vector<4x8xbf16>
    %c0_101 = arith.constant 0 : index
    %c96 = arith.constant 96 : index
    %99 = vector.load %arg12[%c0_101, %c96] : memref<12x256xbf16, #tpu.memory_space<vmem>>, vector<4x8xbf16>
    tpu.vector_store %arg12[%c0_101, %c96], %98 {strides = array<i32>} : memref<12x256xbf16, #tpu.memory_space<vmem>>, vector<4x8xbf16>,
    %100 = vector.extract_strided_slice %97 {offsets = [0, 9], sizes = [4, 8], strides = [1, 1]} : vector<4x18xbf16> to vector<4x8xbf16>
    %c4_102 = arith.constant 4 : index
    %c96_103 = arith.constant 96 : index
    %101 = vector.load %arg12[%c4_102, %c96_103] : memref<12x256xbf16, #tpu.memory_space<vmem>>, vector<4x8xbf16>
    tpu.vector_store %arg12[%c4_102, %c96_103], %100 {strides = array<i32>} : memref<12x256xbf16, #tpu.memory_space<vmem>>, vector<4x8xbf16>,
    %102 = vector.extract_strided_slice %97 {offsets = [0, 1], sizes = [4, 8], strides = [1, 1]} : vector<4x18xbf16> to vector<4x8xbf16>
    %c8_104 = arith.constant 8 : index
    %c96_105 = arith.constant 96 : index
    %103 = vector.load %arg12[%c8_104, %c96_105] : memref<12x256xbf16, #tpu.memory_space<vmem>>, vector<4x8xbf16>
    tpu.vector_store %arg12[%c8_104, %c96_105], %102 {strides = array<i32>} : memref<12x256xbf16, #tpu.memory_space<vmem>>, vector<4x8xbf16>,
    %c0_106 = arith.constant 0 : index
    %c13 = arith.constant 13 : index
    %c0_107 = arith.constant 0 : index
    %c0_108 = arith.constant 0 : index
    %104 = vector.load %arg1[%c0_106, %c13, %c0_107, %c0_108] : memref<1x32x4x18xbf16, #tpu.memory_space<vmem>>, vector<1x1x4x18xbf16>
    %105 = vector.shape_cast %104 : vector<1x1x4x18xbf16> to vector<4x18xbf16>
    %106 = vector.extract_strided_slice %105 {offsets = [0, 0], sizes = [4, 8], strides = [1, 1]} : vector<4x18xbf16> to vector<4x8xbf16>
    %c0_109 = arith.constant 0 : index
    %c104 = arith.constant 104 : index
    %107 = vector.load %arg12[%c0_109, %c104] : memref<12x256xbf16, #tpu.memory_space<vmem>>, vector<4x8xbf16>
    tpu.vector_store %arg12[%c0_109, %c104], %106 {strides = array<i32>} : memref<12x256xbf16, #tpu.memory_space<vmem>>, vector<4x8xbf16>,
    %108 = vector.extract_strided_slice %105 {offsets = [0, 9], sizes = [4, 8], strides = [1, 1]} : vector<4x18xbf16> to vector<4x8xbf16>
    %c4_110 = arith.constant 4 : index
    %c104_111 = arith.constant 104 : index
    %109 = vector.load %arg12[%c4_110, %c104_111] : memref<12x256xbf16, #tpu.memory_space<vmem>>, vector<4x8xbf16>
    tpu.vector_store %arg12[%c4_110, %c104_111], %108 {strides = array<i32>} : memref<12x256xbf16, #tpu.memory_space<vmem>>, vector<4x8xbf16>,
    %110 = vector.extract_strided_slice %105 {offsets = [0, 1], sizes = [4, 8], strides = [1, 1]} : vector<4x18xbf16> to vector<4x8xbf16>
    %c8_112 = arith.constant 8 : index
    %c104_113 = arith.constant 104 : index
    %111 = vector.load %arg12[%c8_112, %c104_113] : memref<12x256xbf16, #tpu.memory_space<vmem>>, vector<4x8xbf16>
    tpu.vector_store %arg12[%c8_112, %c104_113], %110 {strides = array<i32>} : memref<12x256xbf16, #tpu.memory_space<vmem>>, vector<4x8xbf16>,
    %c0_114 = arith.constant 0 : index
    %c14 = arith.constant 14 : index
    %c0_115 = arith.constant 0 : index
    %c0_116 = arith.constant 0 : index
    %112 = vector.load %arg1[%c0_114, %c14, %c0_115, %c0_116] : memref<1x32x4x18xbf16, #tpu.memory_space<vmem>>, vector<1x1x4x18xbf16>
    %113 = vector.shape_cast %112 : vector<1x1x4x18xbf16> to vector<4x18xbf16>
    %114 = vector.extract_strided_slice %113 {offsets = [0, 0], sizes = [4, 8], strides = [1, 1]} : vector<4x18xbf16> to vector<4x8xbf16>
    %c0_117 = arith.constant 0 : index
    %c112 = arith.constant 112 : index
    %115 = vector.load %arg12[%c0_117, %c112] : memref<12x256xbf16, #tpu.memory_space<vmem>>, vector<4x8xbf16>
    tpu.vector_store %arg12[%c0_117, %c112], %114 {strides = array<i32>} : memref<12x256xbf16, #tpu.memory_space<vmem>>, vector<4x8xbf16>,
    %116 = vector.extract_strided_slice %113 {offsets = [0, 9], sizes = [4, 8], strides = [1, 1]} : vector<4x18xbf16> to vector<4x8xbf16>
    %c4_118 = arith.constant 4 : index
    %c112_119 = arith.constant 112 : index
    %117 = vector.load %arg12[%c4_118, %c112_119] : memref<12x256xbf16, #tpu.memory_space<vmem>>, vector<4x8xbf16>
    tpu.vector_store %arg12[%c4_118, %c112_119], %116 {strides = array<i32>} : memref<12x256xbf16, #tpu.memory_space<vmem>>, vector<4x8xbf16>,
    %118 = vector.extract_strided_slice %113 {offsets = [0, 1], sizes = [4, 8], strides = [1, 1]} : vector<4x18xbf16> to vector<4x8xbf16>
    %c8_120 = arith.constant 8 : index
    %c112_121 = arith.constant 112 : index
    %119 = vector.load %arg12[%c8_120, %c112_121] : memref<12x256xbf16, #tpu.memory_space<vmem>>, vector<4x8xbf16>
    tpu.vector_store %arg12[%c8_120, %c112_121], %118 {strides = array<i32>} : memref<12x256xbf16, #tpu.memory_space<vmem>>, vector<4x8xbf16>,
    %c0_122 = arith.constant 0 : index
    %c15 = arith.constant 15 : index
    %c0_123 = arith.constant 0 : index
    %c0_124 = arith.constant 0 : index
    %120 = vector.load %arg1[%c0_122, %c15, %c0_123, %c0_124] : memref<1x32x4x18xbf16, #tpu.memory_space<vmem>>, vector<1x1x4x18xbf16>
    %121 = vector.shape_cast %120 : vector<1x1x4x18xbf16> to vector<4x18xbf16>
    %122 = vector.extract_strided_slice %121 {offsets = [0, 0], sizes = [4, 8], strides = [1, 1]} : vector<4x18xbf16> to vector<4x8xbf16>
    %c0_125 = arith.constant 0 : index
    %c120 = arith.constant 120 : index
    %123 = vector.load %arg12[%c0_125, %c120] : memref<12x256xbf16, #tpu.memory_space<vmem>>, vector<4x8xbf16>
    tpu.vector_store %arg12[%c0_125, %c120], %122 {strides = array<i32>} : memref<12x256xbf16, #tpu.memory_space<vmem>>, vector<4x8xbf16>,
    %124 = vector.extract_strided_slice %121 {offsets = [0, 9], sizes = [4, 8], strides = [1, 1]} : vector<4x18xbf16> to vector<4x8xbf16>
    %c4_126 = arith.constant 4 : index
    %c120_127 = arith.constant 120 : index
    %125 = vector.load %arg12[%c4_126, %c120_127] : memref<12x256xbf16, #tpu.memory_space<vmem>>, vector<4x8xbf16>
    tpu.vector_store %arg12[%c4_126, %c120_127], %124 {strides = array<i32>} : memref<12x256xbf16, #tpu.memory_space<vmem>>, vector<4x8xbf16>,
    %126 = vector.extract_strided_slice %121 {offsets = [0, 1], sizes = [4, 8], strides = [1, 1]} : vector<4x18xbf16> to vector<4x8xbf16>
    %c8_128 = arith.constant 8 : index
    %c120_129 = arith.constant 120 : index
    %127 = vector.load %arg12[%c8_128, %c120_129] : memref<12x256xbf16, #tpu.memory_space<vmem>>, vector<4x8xbf16>
    tpu.vector_store %arg12[%c8_128, %c120_129], %126 {strides = array<i32>} : memref<12x256xbf16, #tpu.memory_space<vmem>>, vector<4x8xbf16>,
    %c0_130 = arith.constant 0 : index
    %c16_131 = arith.constant 16 : index
    %c0_132 = arith.constant 0 : index
    %c0_133 = arith.constant 0 : index
    %128 = vector.load %arg1[%c0_130, %c16_131, %c0_132, %c0_133] : memref<1x32x4x18xbf16, #tpu.memory_space<vmem>>, vector<1x1x4x18xbf16>
    %129 = vector.shape_cast %128 : vector<1x1x4x18xbf16> to vector<4x18xbf16>
    %130 = vector.extract_strided_slice %129 {offsets = [0, 0], sizes = [4, 8], strides = [1, 1]} : vector<4x18xbf16> to vector<4x8xbf16>
    %c0_134 = arith.constant 0 : index
    %c128 = arith.constant 128 : index
    %131 = vector.load %arg12[%c0_134, %c128] : memref<12x256xbf16, #tpu.memory_space<vmem>>, vector<4x8xbf16>
    tpu.vector_store %arg12[%c0_134, %c128], %130 {strides = array<i32>} : memref<12x256xbf16, #tpu.memory_space<vmem>>, vector<4x8xbf16>,
    %132 = vector.extract_strided_slice %129 {offsets = [0, 9], sizes = [4, 8], strides = [1, 1]} : vector<4x18xbf16> to vector<4x8xbf16>
    %c4_135 = arith.constant 4 : index
    %c128_136 = arith.constant 128 : index
    %133 = vector.load %arg12[%c4_135, %c128_136] : memref<12x256xbf16, #tpu.memory_space<vmem>>, vector<4x8xbf16>
    tpu.vector_store %arg12[%c4_135, %c128_136], %132 {strides = array<i32>} : memref<12x256xbf16, #tpu.memory_space<vmem>>, vector<4x8xbf16>,
    %134 = vector.extract_strided_slice %129 {offsets = [0, 1], sizes = [4, 8], strides = [1, 1]} : vector<4x18xbf16> to vector<4x8xbf16>
    %c8_137 = arith.constant 8 : index
    %c128_138 = arith.constant 128 : index
    %135 = vector.load %arg12[%c8_137, %c128_138] : memref<12x256xbf16, #tpu.memory_space<vmem>>, vector<4x8xbf16>
    tpu.vector_store %arg12[%c8_137, %c128_138], %134 {strides = array<i32>} : memref<12x256xbf16, #tpu.memory_space<vmem>>, vector<4x8xbf16>,
    %c0_139 = arith.constant 0 : index
    %c17 = arith.constant 17 : index
    %c0_140 = arith.constant 0 : index
    %c0_141 = arith.constant 0 : index
    %136 = vector.load %arg1[%c0_139, %c17, %c0_140, %c0_141] : memref<1x32x4x18xbf16, #tpu.memory_space<vmem>>, vector<1x1x4x18xbf16>
    %137 = vector.shape_cast %136 : vector<1x1x4x18xbf16> to vector<4x18xbf16>
    %138 = vector.extract_strided_slice %137 {offsets = [0, 0], sizes = [4, 8], strides = [1, 1]} : vector<4x18xbf16> to vector<4x8xbf16>
    %c0_142 = arith.constant 0 : index
    %c136 = arith.constant 136 : index
    %139 = vector.load %arg12[%c0_142, %c136] : memref<12x256xbf16, #tpu.memory_space<vmem>>, vector<4x8xbf16>
    tpu.vector_store %arg12[%c0_142, %c136], %138 {strides = array<i32>} : memref<12x256xbf16, #tpu.memory_space<vmem>>, vector<4x8xbf16>,
    %140 = vector.extract_strided_slice %137 {offsets = [0, 9], sizes = [4, 8], strides = [1, 1]} : vector<4x18xbf16> to vector<4x8xbf16>
    %c4_143 = arith.constant 4 : index
    %c136_144 = arith.constant 136 : index
    %141 = vector.load %arg12[%c4_143, %c136_144] : memref<12x256xbf16, #tpu.memory_space<vmem>>, vector<4x8xbf16>
    tpu.vector_store %arg12[%c4_143, %c136_144], %140 {strides = array<i32>} : memref<12x256xbf16, #tpu.memory_space<vmem>>, vector<4x8xbf16>,
    %142 = vector.extract_strided_slice %137 {offsets = [0, 1], sizes = [4, 8], strides = [1, 1]} : vector<4x18xbf16> to vector<4x8xbf16>
    %c8_145 = arith.constant 8 : index
    %c136_146 = arith.constant 136 : index
    %143 = vector.load %arg12[%c8_145, %c136_146] : memref<12x256xbf16, #tpu.memory_space<vmem>>, vector<4x8xbf16>
    tpu.vector_store %arg12[%c8_145, %c136_146], %142 {strides = array<i32>} : memref<12x256xbf16, #tpu.memory_space<vmem>>, vector<4x8xbf16>,
    %c0_147 = arith.constant 0 : index
    %c18 = arith.constant 18 : index
    %c0_148 = arith.constant 0 : index
    %c0_149 = arith.constant 0 : index
    %144 = vector.load %arg1[%c0_147, %c18, %c0_148, %c0_149] : memref<1x32x4x18xbf16, #tpu.memory_space<vmem>>, vector<1x1x4x18xbf16>
    %145 = vector.shape_cast %144 : vector<1x1x4x18xbf16> to vector<4x18xbf16>
    %146 = vector.extract_strided_slice %145 {offsets = [0, 0], sizes = [4, 8], strides = [1, 1]} : vector<4x18xbf16> to vector<4x8xbf16>
    %c0_150 = arith.constant 0 : index
    %c144 = arith.constant 144 : index
    %147 = vector.load %arg12[%c0_150, %c144] : memref<12x256xbf16, #tpu.memory_space<vmem>>, vector<4x8xbf16>
    tpu.vector_store %arg12[%c0_150, %c144], %146 {strides = array<i32>} : memref<12x256xbf16, #tpu.memory_space<vmem>>, vector<4x8xbf16>,
    %148 = vector.extract_strided_slice %145 {offsets = [0, 9], sizes = [4, 8], strides = [1, 1]} : vector<4x18xbf16> to vector<4x8xbf16>
    %c4_151 = arith.constant 4 : index
    %c144_152 = arith.constant 144 : index
    %149 = vector.load %arg12[%c4_151, %c144_152] : memref<12x256xbf16, #tpu.memory_space<vmem>>, vector<4x8xbf16>
    tpu.vector_store %arg12[%c4_151, %c144_152], %148 {strides = array<i32>} : memref<12x256xbf16, #tpu.memory_space<vmem>>, vector<4x8xbf16>,
    %150 = vector.extract_strided_slice %145 {offsets = [0, 1], sizes = [4, 8], strides = [1, 1]} : vector<4x18xbf16> to vector<4x8xbf16>
    %c8_153 = arith.constant 8 : index
    %c144_154 = arith.constant 144 : index
    %151 = vector.load %arg12[%c8_153, %c144_154] : memref<12x256xbf16, #tpu.memory_space<vmem>>, vector<4x8xbf16>
    tpu.vector_store %arg12[%c8_153, %c144_154], %150 {strides = array<i32>} : memref<12x256xbf16, #tpu.memory_space<vmem>>, vector<4x8xbf16>,
    %c0_155 = arith.constant 0 : index
    %c19 = arith.constant 19 : index
    %c0_156 = arith.constant 0 : index
    %c0_157 = arith.constant 0 : index
    %152 = vector.load %arg1[%c0_155, %c19, %c0_156, %c0_157] : memref<1x32x4x18xbf16, #tpu.memory_space<vmem>>, vector<1x1x4x18xbf16>
    %153 = vector.shape_cast %152 : vector<1x1x4x18xbf16> to vector<4x18xbf16>
    %154 = vector.extract_strided_slice %153 {offsets = [0, 0], sizes = [4, 8], strides = [1, 1]} : vector<4x18xbf16> to vector<4x8xbf16>
    %c0_158 = arith.constant 0 : index
    %c152 = arith.constant 152 : index
    %155 = vector.load %arg12[%c0_158, %c152] : memref<12x256xbf16, #tpu.memory_space<vmem>>, vector<4x8xbf16>
    tpu.vector_store %arg12[%c0_158, %c152], %154 {strides = array<i32>} : memref<12x256xbf16, #tpu.memory_space<vmem>>, vector<4x8xbf16>,
    %156 = vector.extract_strided_slice %153 {offsets = [0, 9], sizes = [4, 8], strides = [1, 1]} : vector<4x18xbf16> to vector<4x8xbf16>
    %c4_159 = arith.constant 4 : index
    %c152_160 = arith.constant 152 : index
    %157 = vector.load %arg12[%c4_159, %c152_160] : memref<12x256xbf16, #tpu.memory_space<vmem>>, vector<4x8xbf16>
    tpu.vector_store %arg12[%c4_159, %c152_160], %156 {strides = array<i32>} : memref<12x256xbf16, #tpu.memory_space<vmem>>, vector<4x8xbf16>,
    %158 = vector.extract_strided_slice %153 {offsets = [0, 1], sizes = [4, 8], strides = [1, 1]} : vector<4x18xbf16> to vector<4x8xbf16>
    %c8_161 = arith.constant 8 : index
    %c152_162 = arith.constant 152 : index
    %159 = vector.load %arg12[%c8_161, %c152_162] : memref<12x256xbf16, #tpu.memory_space<vmem>>, vector<4x8xbf16>
    tpu.vector_store %arg12[%c8_161, %c152_162], %158 {strides = array<i32>} : memref<12x256xbf16, #tpu.memory_space<vmem>>, vector<4x8xbf16>,
    %c0_163 = arith.constant 0 : index
    %c20 = arith.constant 20 : index
    %c0_164 = arith.constant 0 : index
    %c0_165 = arith.constant 0 : index
    %160 = vector.load %arg1[%c0_163, %c20, %c0_164, %c0_165] : memref<1x32x4x18xbf16, #tpu.memory_space<vmem>>, vector<1x1x4x18xbf16>
    %161 = vector.shape_cast %160 : vector<1x1x4x18xbf16> to vector<4x18xbf16>
    %162 = vector.extract_strided_slice %161 {offsets = [0, 0], sizes = [4, 8], strides = [1, 1]} : vector<4x18xbf16> to vector<4x8xbf16>
    %c0_166 = arith.constant 0 : index
    %c160 = arith.constant 160 : index
    %163 = vector.load %arg12[%c0_166, %c160] : memref<12x256xbf16, #tpu.memory_space<vmem>>, vector<4x8xbf16>
    tpu.vector_store %arg12[%c0_166, %c160], %162 {strides = array<i32>} : memref<12x256xbf16, #tpu.memory_space<vmem>>, vector<4x8xbf16>,
    %164 = vector.extract_strided_slice %161 {offsets = [0, 9], sizes = [4, 8], strides = [1, 1]} : vector<4x18xbf16> to vector<4x8xbf16>
    %c4_167 = arith.constant 4 : index
    %c160_168 = arith.constant 160 : index
    %165 = vector.load %arg12[%c4_167, %c160_168] : memref<12x256xbf16, #tpu.memory_space<vmem>>, vector<4x8xbf16>
    tpu.vector_store %arg12[%c4_167, %c160_168], %164 {strides = array<i32>} : memref<12x256xbf16, #tpu.memory_space<vmem>>, vector<4x8xbf16>,
    %166 = vector.extract_strided_slice %161 {offsets = [0, 1], sizes = [4, 8], strides = [1, 1]} : vector<4x18xbf16> to vector<4x8xbf16>
    %c8_169 = arith.constant 8 : index
    %c160_170 = arith.constant 160 : index
    %167 = vector.load %arg12[%c8_169, %c160_170] : memref<12x256xbf16, #tpu.memory_space<vmem>>, vector<4x8xbf16>
    tpu.vector_store %arg12[%c8_169, %c160_170], %166 {strides = array<i32>} : memref<12x256xbf16, #tpu.memory_space<vmem>>, vector<4x8xbf16>,
    %c0_171 = arith.constant 0 : index
    %c21 = arith.constant 21 : index
    %c0_172 = arith.constant 0 : index
    %c0_173 = arith.constant 0 : index
    %168 = vector.load %arg1[%c0_171, %c21, %c0_172, %c0_173] : memref<1x32x4x18xbf16, #tpu.memory_space<vmem>>, vector<1x1x4x18xbf16>
    %169 = vector.shape_cast %168 : vector<1x1x4x18xbf16> to vector<4x18xbf16>
    %170 = vector.extract_strided_slice %169 {offsets = [0, 0], sizes = [4, 8], strides = [1, 1]} : vector<4x18xbf16> to vector<4x8xbf16>
    %c0_174 = arith.constant 0 : index
    %c168 = arith.constant 168 : index
    %171 = vector.load %arg12[%c0_174, %c168] : memref<12x256xbf16, #tpu.memory_space<vmem>>, vector<4x8xbf16>
    tpu.vector_store %arg12[%c0_174, %c168], %170 {strides = array<i32>} : memref<12x256xbf16, #tpu.memory_space<vmem>>, vector<4x8xbf16>,
    %172 = vector.extract_strided_slice %169 {offsets = [0, 9], sizes = [4, 8], strides = [1, 1]} : vector<4x18xbf16> to vector<4x8xbf16>
    %c4_175 = arith.constant 4 : index
    %c168_176 = arith.constant 168 : index
    %173 = vector.load %arg12[%c4_175, %c168_176] : memref<12x256xbf16, #tpu.memory_space<vmem>>, vector<4x8xbf16>
    tpu.vector_store %arg12[%c4_175, %c168_176], %172 {strides = array<i32>} : memref<12x256xbf16, #tpu.memory_space<vmem>>, vector<4x8xbf16>,
    %174 = vector.extract_strided_slice %169 {offsets = [0, 1], sizes = [4, 8], strides = [1, 1]} : vector<4x18xbf16> to vector<4x8xbf16>
    %c8_177 = arith.constant 8 : index
    %c168_178 = arith.constant 168 : index
    %175 = vector.load %arg12[%c8_177, %c168_178] : memref<12x256xbf16, #tpu.memory_space<vmem>>, vector<4x8xbf16>
    tpu.vector_store %arg12[%c8_177, %c168_178], %174 {strides = array<i32>} : memref<12x256xbf16, #tpu.memory_space<vmem>>, vector<4x8xbf16>,
    %c0_179 = arith.constant 0 : index
    %c22 = arith.constant 22 : index
    %c0_180 = arith.constant 0 : index
    %c0_181 = arith.constant 0 : index
    %176 = vector.load %arg1[%c0_179, %c22, %c0_180, %c0_181] : memref<1x32x4x18xbf16, #tpu.memory_space<vmem>>, vector<1x1x4x18xbf16>
    %177 = vector.shape_cast %176 : vector<1x1x4x18xbf16> to vector<4x18xbf16>
    %178 = vector.extract_strided_slice %177 {offsets = [0, 0], sizes = [4, 8], strides = [1, 1]} : vector<4x18xbf16> to vector<4x8xbf16>
    %c0_182 = arith.constant 0 : index
    %c176 = arith.constant 176 : index
    %179 = vector.load %arg12[%c0_182, %c176] : memref<12x256xbf16, #tpu.memory_space<vmem>>, vector<4x8xbf16>
    tpu.vector_store %arg12[%c0_182, %c176], %178 {strides = array<i32>} : memref<12x256xbf16, #tpu.memory_space<vmem>>, vector<4x8xbf16>,
    %180 = vector.extract_strided_slice %177 {offsets = [0, 9], sizes = [4, 8], strides = [1, 1]} : vector<4x18xbf16> to vector<4x8xbf16>
    %c4_183 = arith.constant 4 : index
    %c176_184 = arith.constant 176 : index
    %181 = vector.load %arg12[%c4_183, %c176_184] : memref<12x256xbf16, #tpu.memory_space<vmem>>, vector<4x8xbf16>
    tpu.vector_store %arg12[%c4_183, %c176_184], %180 {strides = array<i32>} : memref<12x256xbf16, #tpu.memory_space<vmem>>, vector<4x8xbf16>,
    %182 = vector.extract_strided_slice %177 {offsets = [0, 1], sizes = [4, 8], strides = [1, 1]} : vector<4x18xbf16> to vector<4x8xbf16>
    %c8_185 = arith.constant 8 : index
    %c176_186 = arith.constant 176 : index
    %183 = vector.load %arg12[%c8_185, %c176_186] : memref<12x256xbf16, #tpu.memory_space<vmem>>, vector<4x8xbf16>
    tpu.vector_store %arg12[%c8_185, %c176_186], %182 {strides = array<i32>} : memref<12x256xbf16, #tpu.memory_space<vmem>>, vector<4x8xbf16>,
    %c0_187 = arith.constant 0 : index
    %c23 = arith.constant 23 : index
    %c0_188 = arith.constant 0 : index
    %c0_189 = arith.constant 0 : index
    %184 = vector.load %arg1[%c0_187, %c23, %c0_188, %c0_189] : memref<1x32x4x18xbf16, #tpu.memory_space<vmem>>, vector<1x1x4x18xbf16>
    %185 = vector.shape_cast %184 : vector<1x1x4x18xbf16> to vector<4x18xbf16>
    %186 = vector.extract_strided_slice %185 {offsets = [0, 0], sizes = [4, 8], strides = [1, 1]} : vector<4x18xbf16> to vector<4x8xbf16>
    %c0_190 = arith.constant 0 : index
    %c184 = arith.constant 184 : index
    %187 = vector.load %arg12[%c0_190, %c184] : memref<12x256xbf16, #tpu.memory_space<vmem>>, vector<4x8xbf16>
    tpu.vector_store %arg12[%c0_190, %c184], %186 {strides = array<i32>} : memref<12x256xbf16, #tpu.memory_space<vmem>>, vector<4x8xbf16>,
    %188 = vector.extract_strided_slice %185 {offsets = [0, 9], sizes = [4, 8], strides = [1, 1]} : vector<4x18xbf16> to vector<4x8xbf16>
    %c4_191 = arith.constant 4 : index
    %c184_192 = arith.constant 184 : index
    %189 = vector.load %arg12[%c4_191, %c184_192] : memref<12x256xbf16, #tpu.memory_space<vmem>>, vector<4x8xbf16>
    tpu.vector_store %arg12[%c4_191, %c184_192], %188 {strides = array<i32>} : memref<12x256xbf16, #tpu.memory_space<vmem>>, vector<4x8xbf16>,
    %190 = vector.extract_strided_slice %185 {offsets = [0, 1], sizes = [4, 8], strides = [1, 1]} : vector<4x18xbf16> to vector<4x8xbf16>
    %c8_193 = arith.constant 8 : index
    %c184_194 = arith.constant 184 : index
    %191 = vector.load %arg12[%c8_193, %c184_194] : memref<12x256xbf16, #tpu.memory_space<vmem>>, vector<4x8xbf16>
    tpu.vector_store %arg12[%c8_193, %c184_194], %190 {strides = array<i32>} : memref<12x256xbf16, #tpu.memory_space<vmem>>, vector<4x8xbf16>,
    %c0_195 = arith.constant 0 : index
    %c24_196 = arith.constant 24 : index
    %c0_197 = arith.constant 0 : index
    %c0_198 = arith.constant 0 : index
    %192 = vector.load %arg1[%c0_195, %c24_196, %c0_197, %c0_198] : memref<1x32x4x18xbf16, #tpu.memory_space<vmem>>, vector<1x1x4x18xbf16>
    %193 = vector.shape_cast %192 : vector<1x1x4x18xbf16> to vector<4x18xbf16>
    %194 = vector.extract_strided_slice %193 {offsets = [0, 0], sizes = [4, 8], strides = [1, 1]} : vector<4x18xbf16> to vector<4x8xbf16>
    %c0_199 = arith.constant 0 : index
    %c192 = arith.constant 192 : index
    %195 = vector.load %arg12[%c0_199, %c192] : memref<12x256xbf16, #tpu.memory_space<vmem>>, vector<4x8xbf16>
    tpu.vector_store %arg12[%c0_199, %c192], %194 {strides = array<i32>} : memref<12x256xbf16, #tpu.memory_space<vmem>>, vector<4x8xbf16>,
    %196 = vector.extract_strided_slice %193 {offsets = [0, 9], sizes = [4, 8], strides = [1, 1]} : vector<4x18xbf16> to vector<4x8xbf16>
    %c4_200 = arith.constant 4 : index
    %c192_201 = arith.constant 192 : index
    %197 = vector.load %arg12[%c4_200, %c192_201] : memref<12x256xbf16, #tpu.memory_space<vmem>>, vector<4x8xbf16>
    tpu.vector_store %arg12[%c4_200, %c192_201], %196 {strides = array<i32>} : memref<12x256xbf16, #tpu.memory_space<vmem>>, vector<4x8xbf16>,
    %198 = vector.extract_strided_slice %193 {offsets = [0, 1], sizes = [4, 8], strides = [1, 1]} : vector<4x18xbf16> to vector<4x8xbf16>
    %c8_202 = arith.constant 8 : index
    %c192_203 = arith.constant 192 : index
    %199 = vector.load %arg12[%c8_202, %c192_203] : memref<12x256xbf16, #tpu.memory_space<vmem>>, vector<4x8xbf16>
    tpu.vector_store %arg12[%c8_202, %c192_203], %198 {strides = array<i32>} : memref<12x256xbf16, #tpu.memory_space<vmem>>, vector<4x8xbf16>,
    %c0_204 = arith.constant 0 : index
    %c25 = arith.constant 25 : index
    %c0_205 = arith.constant 0 : index
    %c0_206 = arith.constant 0 : index
    %200 = vector.load %arg1[%c0_204, %c25, %c0_205, %c0_206] : memref<1x32x4x18xbf16, #tpu.memory_space<vmem>>, vector<1x1x4x18xbf16>
    %201 = vector.shape_cast %200 : vector<1x1x4x18xbf16> to vector<4x18xbf16>
    %202 = vector.extract_strided_slice %201 {offsets = [0, 0], sizes = [4, 8], strides = [1, 1]} : vector<4x18xbf16> to vector<4x8xbf16>
    %c0_207 = arith.constant 0 : index
    %c200 = arith.constant 200 : index
    %203 = vector.load %arg12[%c0_207, %c200] : memref<12x256xbf16, #tpu.memory_space<vmem>>, vector<4x8xbf16>
    tpu.vector_store %arg12[%c0_207, %c200], %202 {strides = array<i32>} : memref<12x256xbf16, #tpu.memory_space<vmem>>, vector<4x8xbf16>,
    %204 = vector.extract_strided_slice %201 {offsets = [0, 9], sizes = [4, 8], strides = [1, 1]} : vector<4x18xbf16> to vector<4x8xbf16>
    %c4_208 = arith.constant 4 : index
    %c200_209 = arith.constant 200 : index
    %205 = vector.load %arg12[%c4_208, %c200_209] : memref<12x256xbf16, #tpu.memory_space<vmem>>, vector<4x8xbf16>
    tpu.vector_store %arg12[%c4_208, %c200_209], %204 {strides = array<i32>} : memref<12x256xbf16, #tpu.memory_space<vmem>>, vector<4x8xbf16>,
    %206 = vector.extract_strided_slice %201 {offsets = [0, 1], sizes = [4, 8], strides = [1, 1]} : vector<4x18xbf16> to vector<4x8xbf16>
    %c8_210 = arith.constant 8 : index
    %c200_211 = arith.constant 200 : index
    %207 = vector.load %arg12[%c8_210, %c200_211] : memref<12x256xbf16, #tpu.memory_space<vmem>>, vector<4x8xbf16>
    tpu.vector_store %arg12[%c8_210, %c200_211], %206 {strides = array<i32>} : memref<12x256xbf16, #tpu.memory_space<vmem>>, vector<4x8xbf16>,
    %c0_212 = arith.constant 0 : index
    %c26 = arith.constant 26 : index
    %c0_213 = arith.constant 0 : index
    %c0_214 = arith.constant 0 : index
    %208 = vector.load %arg1[%c0_212, %c26, %c0_213, %c0_214] : memref<1x32x4x18xbf16, #tpu.memory_space<vmem>>, vector<1x1x4x18xbf16>
    %209 = vector.shape_cast %208 : vector<1x1x4x18xbf16> to vector<4x18xbf16>
    %210 = vector.extract_strided_slice %209 {offsets = [0, 0], sizes = [4, 8], strides = [1, 1]} : vector<4x18xbf16> to vector<4x8xbf16>
    %c0_215 = arith.constant 0 : index
    %c208 = arith.constant 208 : index
    %211 = vector.load %arg12[%c0_215, %c208] : memref<12x256xbf16, #tpu.memory_space<vmem>>, vector<4x8xbf16>
    tpu.vector_store %arg12[%c0_215, %c208], %210 {strides = array<i32>} : memref<12x256xbf16, #tpu.memory_space<vmem>>, vector<4x8xbf16>,
    %212 = vector.extract_strided_slice %209 {offsets = [0, 9], sizes = [4, 8], strides = [1, 1]} : vector<4x18xbf16> to vector<4x8xbf16>
    %c4_216 = arith.constant 4 : index
    %c208_217 = arith.constant 208 : index
    %213 = vector.load %arg12[%c4_216, %c208_217] : memref<12x256xbf16, #tpu.memory_space<vmem>>, vector<4x8xbf16>
    tpu.vector_store %arg12[%c4_216, %c208_217], %212 {strides = array<i32>} : memref<12x256xbf16, #tpu.memory_space<vmem>>, vector<4x8xbf16>,
    %214 = vector.extract_strided_slice %209 {offsets = [0, 1], sizes = [4, 8], strides = [1, 1]} : vector<4x18xbf16> to vector<4x8xbf16>
    %c8_218 = arith.constant 8 : index
    %c208_219 = arith.constant 208 : index
    %215 = vector.load %arg12[%c8_218, %c208_219] : memref<12x256xbf16, #tpu.memory_space<vmem>>, vector<4x8xbf16>
    tpu.vector_store %arg12[%c8_218, %c208_219], %214 {strides = array<i32>} : memref<12x256xbf16, #tpu.memory_space<vmem>>, vector<4x8xbf16>,
    %c0_220 = arith.constant 0 : index
    %c27 = arith.constant 27 : index
    %c0_221 = arith.constant 0 : index
    %c0_222 = arith.constant 0 : index
    %216 = vector.load %arg1[%c0_220, %c27, %c0_221, %c0_222] : memref<1x32x4x18xbf16, #tpu.memory_space<vmem>>, vector<1x1x4x18xbf16>
    %217 = vector.shape_cast %216 : vector<1x1x4x18xbf16> to vector<4x18xbf16>
    %218 = vector.extract_strided_slice %217 {offsets = [0, 0], sizes = [4, 8], strides = [1, 1]} : vector<4x18xbf16> to vector<4x8xbf16>
    %c0_223 = arith.constant 0 : index
    %c216 = arith.constant 216 : index
    %219 = vector.load %arg12[%c0_223, %c216] : memref<12x256xbf16, #tpu.memory_space<vmem>>, vector<4x8xbf16>
    tpu.vector_store %arg12[%c0_223, %c216], %218 {strides = array<i32>} : memref<12x256xbf16, #tpu.memory_space<vmem>>, vector<4x8xbf16>,
    %220 = vector.extract_strided_slice %217 {offsets = [0, 9], sizes = [4, 8], strides = [1, 1]} : vector<4x18xbf16> to vector<4x8xbf16>
    %c4_224 = arith.constant 4 : index
    %c216_225 = arith.constant 216 : index
    %221 = vector.load %arg12[%c4_224, %c216_225] : memref<12x256xbf16, #tpu.memory_space<vmem>>, vector<4x8xbf16>
    tpu.vector_store %arg12[%c4_224, %c216_225], %220 {strides = array<i32>} : memref<12x256xbf16, #tpu.memory_space<vmem>>, vector<4x8xbf16>,
    %222 = vector.extract_strided_slice %217 {offsets = [0, 1], sizes = [4, 8], strides = [1, 1]} : vector<4x18xbf16> to vector<4x8xbf16>
    %c8_226 = arith.constant 8 : index
    %c216_227 = arith.constant 216 : index
    %223 = vector.load %arg12[%c8_226, %c216_227] : memref<12x256xbf16, #tpu.memory_space<vmem>>, vector<4x8xbf16>
    tpu.vector_store %arg12[%c8_226, %c216_227], %222 {strides = array<i32>} : memref<12x256xbf16, #tpu.memory_space<vmem>>, vector<4x8xbf16>,
    %c0_228 = arith.constant 0 : index
    %c28 = arith.constant 28 : index
    %c0_229 = arith.constant 0 : index
    %c0_230 = arith.constant 0 : index
    %224 = vector.load %arg1[%c0_228, %c28, %c0_229, %c0_230] : memref<1x32x4x18xbf16, #tpu.memory_space<vmem>>, vector<1x1x4x18xbf16>
    %225 = vector.shape_cast %224 : vector<1x1x4x18xbf16> to vector<4x18xbf16>
    %226 = vector.extract_strided_slice %225 {offsets = [0, 0], sizes = [4, 8], strides = [1, 1]} : vector<4x18xbf16> to vector<4x8xbf16>
    %c0_231 = arith.constant 0 : index
    %c224 = arith.constant 224 : index
    %227 = vector.load %arg12[%c0_231, %c224] : memref<12x256xbf16, #tpu.memory_space<vmem>>, vector<4x8xbf16>
    tpu.vector_store %arg12[%c0_231, %c224], %226 {strides = array<i32>} : memref<12x256xbf16, #tpu.memory_space<vmem>>, vector<4x8xbf16>,
    %228 = vector.extract_strided_slice %225 {offsets = [0, 9], sizes = [4, 8], strides = [1, 1]} : vector<4x18xbf16> to vector<4x8xbf16>
    %c4_232 = arith.constant 4 : index
    %c224_233 = arith.constant 224 : index
    %229 = vector.load %arg12[%c4_232, %c224_233] : memref<12x256xbf16, #tpu.memory_space<vmem>>, vector<4x8xbf16>
    tpu.vector_store %arg12[%c4_232, %c224_233], %228 {strides = array<i32>} : memref<12x256xbf16, #tpu.memory_space<vmem>>, vector<4x8xbf16>,
    %230 = vector.extract_strided_slice %225 {offsets = [0, 1], sizes = [4, 8], strides = [1, 1]} : vector<4x18xbf16> to vector<4x8xbf16>
    %c8_234 = arith.constant 8 : index
    %c224_235 = arith.constant 224 : index
    %231 = vector.load %arg12[%c8_234, %c224_235] : memref<12x256xbf16, #tpu.memory_space<vmem>>, vector<4x8xbf16>
    tpu.vector_store %arg12[%c8_234, %c224_235], %230 {strides = array<i32>} : memref<12x256xbf16, #tpu.memory_space<vmem>>, vector<4x8xbf16>,
    %c0_236 = arith.constant 0 : index
    %c29 = arith.constant 29 : index
    %c0_237 = arith.constant 0 : index
    %c0_238 = arith.constant 0 : index
    %232 = vector.load %arg1[%c0_236, %c29, %c0_237, %c0_238] : memref<1x32x4x18xbf16, #tpu.memory_space<vmem>>, vector<1x1x4x18xbf16>
    %233 = vector.shape_cast %232 : vector<1x1x4x18xbf16> to vector<4x18xbf16>
    %234 = vector.extract_strided_slice %233 {offsets = [0, 0], sizes = [4, 8], strides = [1, 1]} : vector<4x18xbf16> to vector<4x8xbf16>
    %c0_239 = arith.constant 0 : index
    %c232 = arith.constant 232 : index
    %235 = vector.load %arg12[%c0_239, %c232] : memref<12x256xbf16, #tpu.memory_space<vmem>>, vector<4x8xbf16>
    tpu.vector_store %arg12[%c0_239, %c232], %234 {strides = array<i32>} : memref<12x256xbf16, #tpu.memory_space<vmem>>, vector<4x8xbf16>,
    %236 = vector.extract_strided_slice %233 {offsets = [0, 9], sizes = [4, 8], strides = [1, 1]} : vector<4x18xbf16> to vector<4x8xbf16>
    %c4_240 = arith.constant 4 : index
    %c232_241 = arith.constant 232 : index
    %237 = vector.load %arg12[%c4_240, %c232_241] : memref<12x256xbf16, #tpu.memory_space<vmem>>, vector<4x8xbf16>
    tpu.vector_store %arg12[%c4_240, %c232_241], %236 {strides = array<i32>} : memref<12x256xbf16, #tpu.memory_space<vmem>>, vector<4x8xbf16>,
    %238 = vector.extract_strided_slice %233 {offsets = [0, 1], sizes = [4, 8], strides = [1, 1]} : vector<4x18xbf16> to vector<4x8xbf16>
    %c8_242 = arith.constant 8 : index
    %c232_243 = arith.constant 232 : index
    %239 = vector.load %arg12[%c8_242, %c232_243] : memref<12x256xbf16, #tpu.memory_space<vmem>>, vector<4x8xbf16>
    tpu.vector_store %arg12[%c8_242, %c232_243], %238 {strides = array<i32>} : memref<12x256xbf16, #tpu.memory_space<vmem>>, vector<4x8xbf16>,
    %c0_244 = arith.constant 0 : index
    %c30 = arith.constant 30 : index
    %c0_245 = arith.constant 0 : index
    %c0_246 = arith.constant 0 : index
    %240 = vector.load %arg1[%c0_244, %c30, %c0_245, %c0_246] : memref<1x32x4x18xbf16, #tpu.memory_space<vmem>>, vector<1x1x4x18xbf16>
    %241 = vector.shape_cast %240 : vector<1x1x4x18xbf16> to vector<4x18xbf16>
    %242 = vector.extract_strided_slice %241 {offsets = [0, 0], sizes = [4, 8], strides = [1, 1]} : vector<4x18xbf16> to vector<4x8xbf16>
    %c0_247 = arith.constant 0 : index
    %c240 = arith.constant 240 : index
    %243 = vector.load %arg12[%c0_247, %c240] : memref<12x256xbf16, #tpu.memory_space<vmem>>, vector<4x8xbf16>
    tpu.vector_store %arg12[%c0_247, %c240], %242 {strides = array<i32>} : memref<12x256xbf16, #tpu.memory_space<vmem>>, vector<4x8xbf16>,
    %244 = vector.extract_strided_slice %241 {offsets = [0, 9], sizes = [4, 8], strides = [1, 1]} : vector<4x18xbf16> to vector<4x8xbf16>
    %c4_248 = arith.constant 4 : index
    %c240_249 = arith.constant 240 : index
    %245 = vector.load %arg12[%c4_248, %c240_249] : memref<12x256xbf16, #tpu.memory_space<vmem>>, vector<4x8xbf16>
    tpu.vector_store %arg12[%c4_248, %c240_249], %244 {strides = array<i32>} : memref<12x256xbf16, #tpu.memory_space<vmem>>, vector<4x8xbf16>,
    %246 = vector.extract_strided_slice %241 {offsets = [0, 1], sizes = [4, 8], strides = [1, 1]} : vector<4x18xbf16> to vector<4x8xbf16>
    %c8_250 = arith.constant 8 : index
    %c240_251 = arith.constant 240 : index
    %247 = vector.load %arg12[%c8_250, %c240_251] : memref<12x256xbf16, #tpu.memory_space<vmem>>, vector<4x8xbf16>
    tpu.vector_store %arg12[%c8_250, %c240_251], %246 {strides = array<i32>} : memref<12x256xbf16, #tpu.memory_space<vmem>>, vector<4x8xbf16>,
    %c0_252 = arith.constant 0 : index
    %c31 = arith.constant 31 : index
    %c0_253 = arith.constant 0 : index
    %c0_254 = arith.constant 0 : index
    %248 = vector.load %arg1[%c0_252, %c31, %c0_253, %c0_254] : memref<1x32x4x18xbf16, #tpu.memory_space<vmem>>, vector<1x1x4x18xbf16>
    %249 = vector.shape_cast %248 : vector<1x1x4x18xbf16> to vector<4x18xbf16>
    %250 = vector.extract_strided_slice %249 {offsets = [0, 0], sizes = [4, 8], strides = [1, 1]} : vector<4x18xbf16> to vector<4x8xbf16>
    %c0_255 = arith.constant 0 : index
    %c248 = arith.constant 248 : index
    %251 = vector.load %arg12[%c0_255, %c248] : memref<12x256xbf16, #tpu.memory_space<vmem>>, vector<4x8xbf16>
    tpu.vector_store %arg12[%c0_255, %c248], %250 {strides = array<i32>} : memref<12x256xbf16, #tpu.memory_space<vmem>>, vector<4x8xbf16>,
    %252 = vector.extract_strided_slice %249 {offsets = [0, 9], sizes = [4, 8], strides = [1, 1]} : vector<4x18xbf16> to vector<4x8xbf16>
    %c4_256 = arith.constant 4 : index
    %c248_257 = arith.constant 248 : index
    %253 = vector.load %arg12[%c4_256, %c248_257] : memref<12x256xbf16, #tpu.memory_space<vmem>>, vector<4x8xbf16>
    tpu.vector_store %arg12[%c4_256, %c248_257], %252 {strides = array<i32>} : memref<12x256xbf16, #tpu.memory_space<vmem>>, vector<4x8xbf16>,
    %254 = vector.extract_strided_slice %249 {offsets = [0, 1], sizes = [4, 8], strides = [1, 1]} : vector<4x18xbf16> to vector<4x8xbf16>
    %c8_258 = arith.constant 8 : index
    %c248_259 = arith.constant 248 : index
    %255 = vector.load %arg12[%c8_258, %c248_259] : memref<12x256xbf16, #tpu.memory_space<vmem>>, vector<4x8xbf16>
    tpu.vector_store %arg12[%c8_258, %c248_259], %254 {strides = array<i32>} : memref<12x256xbf16, #tpu.memory_space<vmem>>, vector<4x8xbf16>,
    %c0_260 = arith.constant 0 : index
    %c0_261 = arith.constant 0 : index
    %256 = vector.load %arg2[%c0_260, %c0_261] : memref<8x12xbf16, #tpu.memory_space<vmem>>, vector<8x12xbf16>
    %c0_262 = arith.constant 0 : index
    %c0_263 = arith.constant 0 : index
    %257 = vector.load %arg12[%c0_262, %c0_263] : memref<12x256xbf16, #tpu.memory_space<vmem>>, vector<12x256xbf16>
    %cst = arith.constant dense<0.000000e+00> : vector<8x256xf32>
    %258 = tpu.matmul %256, %257, %cst {dimension_numbers = #tpu.dot_dimension_numbers<[1], [0], [0], [1], [0, 0, 1, 1], [], []>} : vector<8x12xbf16>, vector<12x256xbf16>, vector<8x256xf32> -> vector<8x256xf32>
    %c0_264 = arith.constant 0 : index
    %c0_265 = arith.constant 0 : index
    %259 = vector.load %arg3[%c0_264, %c0_265] : memref<8x1xf32, #tpu.memory_space<vmem>>, vector<8x1xf32>
    %260 = vector.broadcast %259 : vector<8x1xf32> to vector<8x256xf32>
    %261 = arith.addf %258, %260 : vector<8x256xf32>
    %c0_266 = arith.constant 0 : index
    %c0_267 = arith.constant 0 : index
    %262 = vector.load %arg6[%c0_266, %c0_267] : memref<1x256xf32, #tpu.memory_space<vmem>>, vector<1x256xf32>
    %263 = vector.broadcast %262 : vector<1x256xf32> to vector<8x256xf32>
    %264 = arith.mulf %261, %263 : vector<8x256xf32>
    %265 = vector.shape_cast %264 : vector<8x256xf32> to vector<1x8x256xf32>
    %cst_268 = arith.constant dense<0.000000e+00> : vector<1xf32>
    %266 = vector.multi_reduction <add>, %265, %cst_268 [1, 2] : vector<1x8x256xf32> to vector<1xf32>
    %267 = vector.shape_cast %266 : vector<1xf32> to vector<1x1x1xf32>
    %268 = vector.extract %267[0, 0, 0] : f32 from vector<1x1x1xf32>
    %cst_269 = arith.constant 9.765625E-4 : f32
    %269 = arith.mulf %268, %cst_269 : f32
    %270 = arith.mulf %264, %261 : vector<8x256xf32>
    %271 = vector.shape_cast %270 : vector<8x256xf32> to vector<1x8x256xf32>
    %cst_270 = arith.constant dense<0.000000e+00> : vector<1xf32>
    %272 = vector.multi_reduction <add>, %271, %cst_270 [1, 2] : vector<1x8x256xf32> to vector<1xf32>
    %273 = vector.shape_cast %272 : vector<1xf32> to vector<1x1x1xf32>
    %274 = vector.extract %273[0, 0, 0] : f32 from vector<1x1x1xf32>
    %cst_271 = arith.constant 9.765625E-4 : f32
    %275 = arith.mulf %274, %cst_271 : f32
    %276 = arith.mulf %269, %269 : f32
    %277 = arith.subf %275, %276 : f32
    %cst_272 = arith.constant 9.99999974E-6 : f32
    %278 = arith.addf %277, %cst_272 : f32
    %279 = math.rsqrt %278 : f32
    %280 = vector.broadcast %269 : f32 to vector<8x256xf32>
    %281 = arith.subf %261, %280 : vector<8x256xf32>
    %282 = vector.broadcast %279 : f32 to vector<8x256xf32>
    %283 = arith.mulf %281, %282 : vector<8x256xf32>
    %c0_273 = arith.constant 0 : index
    %c0_274 = arith.constant 0 : index
    %284 = vector.load %arg4[%c0_273, %c0_274] : memref<8x256xbf16, #tpu.memory_space<vmem>>, vector<8x256xbf16>
    %285 = arith.extf %284 : vector<8x256xbf16> to vector<8x256xf32>
    %286 = arith.mulf %283, %285 : vector<8x256xf32>
    %c0_275 = arith.constant 0 : index
    %c0_276 = arith.constant 0 : index
    %287 = vector.load %arg5[%c0_275, %c0_276] : memref<8x256xbf16, #tpu.memory_space<vmem>>, vector<8x256xbf16>
    %288 = arith.extf %287 : vector<8x256xbf16> to vector<8x256xf32>
    %289 = arith.addf %286, %288 : vector<8x256xf32>
    %cst_277 = arith.constant 0.000000e+00 : f32
    %290 = vector.broadcast %cst_277 : f32 to vector<8x256xf32>
    %291 = arith.maximumf %289, %290 : vector<8x256xf32>
    %c0_278 = arith.constant 0 : index
    %c0_279 = arith.constant 0 : index
    %292 = vector.load %arg13[%c0_278, %c0_279] : memref<8x256xf32, #tpu.memory_space<vmem>>, vector<8x256xf32>
    tpu.vector_store %arg13[%c0_278, %c0_279], %291 {strides = array<i32>} : memref<8x256xf32, #tpu.memory_space<vmem>>, vector<8x256xf32>,
    %c0_280 = arith.constant 0 : index
    %c0_281 = arith.constant 0 : index
    %293 = vector.load %arg13[%c0_280, %c0_281] : memref<8x256xf32, #tpu.memory_space<vmem>>, vector<8x128xf32>
    %c0_282 = arith.constant 0 : index
    %c0_283 = arith.constant 0 : index
    %294 = vector.load %arg14[%c0_282, %c0_283] : memref<24x128xf32, #tpu.memory_space<vmem>>, vector<8x128xf32>
    tpu.vector_store %arg14[%c0_282, %c0_283], %293 {strides = array<i32>} : memref<24x128xf32, #tpu.memory_space<vmem>>, vector<8x128xf32>,
    %c0_284 = arith.constant 0 : index
    %c128_285 = arith.constant 128 : index
    %295 = vector.load %arg13[%c0_284, %c128_285] : memref<8x256xf32, #tpu.memory_space<vmem>>, vector<8x128xf32>
    %c8_286 = arith.constant 8 : index
    %c0_287 = arith.constant 0 : index
    %296 = vector.load %arg14[%c8_286, %c0_287] : memref<24x128xf32, #tpu.memory_space<vmem>>, vector<8x128xf32>
    tpu.vector_store %arg14[%c8_286, %c0_287], %295 {strides = array<i32>} : memref<24x128xf32, #tpu.memory_space<vmem>>, vector<8x128xf32>,
    %c0_288 = arith.constant 0 : index
    %c8_289 = arith.constant 8 : index
    %297 = vector.load %arg13[%c0_288, %c8_289] : memref<8x256xf32, #tpu.memory_space<vmem>>, vector<8x128xf32>
    %c16_290 = arith.constant 16 : index
    %c0_291 = arith.constant 0 : index
    %298 = vector.load %arg14[%c16_290, %c0_291] : memref<24x128xf32, #tpu.memory_space<vmem>>, vector<8x128xf32>
    tpu.vector_store %arg14[%c16_290, %c0_291], %297 {strides = array<i32>} : memref<24x128xf32, #tpu.memory_space<vmem>>, vector<8x128xf32>,
    %c0_292 = arith.constant 0 : index
    %c0_293 = arith.constant 0 : index
    %299 = vector.load %arg7[%c0_292, %c0_293] : memref<8x24xf32, #tpu.memory_space<vmem>>, vector<8x24xf32>
    %c0_294 = arith.constant 0 : index
    %c0_295 = arith.constant 0 : index
    %300 = vector.load %arg14[%c0_294, %c0_295] : memref<24x128xf32, #tpu.memory_space<vmem>>, vector<24x128xf32>
    %cst_296 = arith.constant dense<0.000000e+00> : vector<8x128xf32>
    %301 = tpu.matmul %299, %300, %cst_296 {dimension_numbers = #tpu.dot_dimension_numbers<[1], [0], [0], [1], [0, 0, 1, 1], [], []>} : vector<8x24xf32>, vector<24x128xf32>, vector<8x128xf32> -> vector<8x128xf32>
    %c0_297 = arith.constant 0 : index
    %c0_298 = arith.constant 0 : index
    %302 = vector.load %arg8[%c0_297, %c0_298] : memref<8x1xf32, #tpu.memory_space<vmem>>, vector<8x1xf32>
    %303 = vector.broadcast %302 : vector<8x1xf32> to vector<8x128xf32>
    %304 = arith.addf %301, %303 : vector<8x128xf32>
    %305 = vector.extract_strided_slice %304 {offsets = [0, 0], sizes = [8, 64], strides = [1, 1]} : vector<8x128xf32> to vector<8x64xf32>
    %306 = vector.shape_cast %305 : vector<8x64xf32> to vector<1x8x64xf32>
    %cst_299 = arith.constant dense<0.000000e+00> : vector<1xf32>
    %307 = vector.multi_reduction <add>, %306, %cst_299 [1, 2] : vector<1x8x64xf32> to vector<1xf32>
    %308 = vector.shape_cast %307 : vector<1xf32> to vector<1x1x1xf32>
    %309 = vector.extract %308[0, 0, 0] : f32 from vector<1x1x1xf32>
    %cst_300 = arith.constant 0.001953125 : f32
    %310 = arith.mulf %309, %cst_300 : f32
    %311 = arith.mulf %305, %305 : vector<8x64xf32>
    %312 = vector.shape_cast %311 : vector<8x64xf32> to vector<1x8x64xf32>
    %cst_301 = arith.constant dense<0.000000e+00> : vector<1xf32>
    %313 = vector.multi_reduction <add>, %312, %cst_301 [1, 2] : vector<1x8x64xf32> to vector<1xf32>
    %314 = vector.shape_cast %313 : vector<1xf32> to vector<1x1x1xf32>
    %315 = vector.extract %314[0, 0, 0] : f32 from vector<1x1x1xf32>
    %cst_302 = arith.constant 0.001953125 : f32
    %316 = arith.mulf %315, %cst_302 : f32
    %317 = arith.mulf %310, %310 : f32
    %318 = arith.subf %316, %317 : f32
    %cst_303 = arith.constant 9.99999974E-6 : f32
    %319 = arith.addf %318, %cst_303 : f32
    %320 = math.rsqrt %319 : f32
    %321 = vector.broadcast %310 : f32 to vector<8x128xf32>
    %322 = arith.subf %304, %321 : vector<8x128xf32>
    %323 = vector.broadcast %320 : f32 to vector<8x128xf32>
    %324 = arith.mulf %322, %323 : vector<8x128xf32>
    %c0_304 = arith.constant 0 : index
    %c0_305 = arith.constant 0 : index
    %325 = vector.load %arg9[%c0_304, %c0_305] : memref<8x128xbf16, #tpu.memory_space<vmem>>, vector<8x128xbf16>
    %326 = arith.extf %325 : vector<8x128xbf16> to vector<8x128xf32>
    %327 = arith.mulf %324, %326 : vector<8x128xf32>
    %c0_306 = arith.constant 0 : index
    %c0_307 = arith.constant 0 : index
    %328 = vector.load %arg10[%c0_306, %c0_307] : memref<8x128xbf16, #tpu.memory_space<vmem>>, vector<8x128xbf16>
    %329 = arith.extf %328 : vector<8x128xbf16> to vector<8x128xf32>
    %330 = arith.addf %327, %329 : vector<8x128xf32>
    %cst_308 = arith.constant 0.000000e+00 : f32
    %331 = vector.broadcast %cst_308 : f32 to vector<8x128xf32>
    %332 = arith.maximumf %330, %331 : vector<8x128xf32>
    %c0_309 = arith.constant 0 : index
    %c0_310 = arith.constant 0 : index
    %c0_311 = arith.constant 0 : index
    %333 = vector.load %arg11[%c0_309, %c0_310, %c0_311] : memref<1x8x128xf32, #tpu.memory_space<vmem>>, vector<1x8x128xf32>
    %334 = vector.shape_cast %333 : vector<1x8x128xf32> to vector<8x128xf32>
    %335 = vector.shape_cast %332 : vector<8x128xf32> to vector<1x8x128xf32>
    tpu.vector_store %arg11[%c0_309, %c0_310, %c0_311], %335 {strides = array<i32>} : memref<1x8x128xf32, #tpu.memory_space<vmem>>, vector<1x8x128xf32>,
    return
  }
  func.func @transform_0(%arg0: i32) -> (i32, i32, i32, i32) {
    %c0_i32 = arith.constant 0 : i32
    %c0_i32_0 = arith.constant 0 : i32
    %c0_i32_1 = arith.constant 0 : i32
    %c0_i32_2 = arith.constant 0 : i32
    return %arg0, %c0_i32, %c0_i32_0, %c0_i32_1 : i32, i32, i32, i32
  }
  func.func @transform_1(%arg0: i32) -> (i32, i32) {
    %c0_i32 = arith.constant 0 : i32
    %c0_i32_0 = arith.constant 0 : i32
    %c0_i32_1 = arith.constant 0 : i32
    return %c0_i32, %c0_i32_0 : i32, i32
  }
  func.func @transform_2(%arg0: i32) -> (i32, i32) {
    %c0_i32 = arith.constant 0 : i32
    %c0_i32_0 = arith.constant 0 : i32
    %c0_i32_1 = arith.constant 0 : i32
    return %c0_i32, %c0_i32_0 : i32, i32
  }
  func.func @transform_3(%arg0: i32) -> (i32, i32) {
    %c0_i32 = arith.constant 0 : i32
    %c0_i32_0 = arith.constant 0 : i32
    %c0_i32_1 = arith.constant 0 : i32
    return %c0_i32, %c0_i32_0 : i32, i32
  }
  func.func @transform_4(%arg0: i32) -> (i32, i32) {
    %c0_i32 = arith.constant 0 : i32
    %c0_i32_0 = arith.constant 0 : i32
    %c0_i32_1 = arith.constant 0 : i32
    return %c0_i32, %c0_i32_0 : i32, i32
  }
  func.func @transform_5(%arg0: i32) -> (i32, i32) {
    %c0_i32 = arith.constant 0 : i32
    %c0_i32_0 = arith.constant 0 : i32
    %c0_i32_1 = arith.constant 0 : i32
    return %c0_i32, %c0_i32_0 : i32, i32
  }
  func.func @transform_6(%arg0: i32) -> (i32, i32) {
    %c0_i32 = arith.constant 0 : i32
    %c0_i32_0 = arith.constant 0 : i32
    %c0_i32_1 = arith.constant 0 : i32
    return %c0_i32, %c0_i32_0 : i32, i32
  }
  func.func @transform_7(%arg0: i32) -> (i32, i32) {
    %c0_i32 = arith.constant 0 : i32
    %c0_i32_0 = arith.constant 0 : i32
    %c0_i32_1 = arith.constant 0 : i32
    return %c0_i32, %c0_i32_0 : i32, i32
  }
  func.func @transform_8(%arg0: i32) -> (i32, i32) {
    %c0_i32 = arith.constant 0 : i32
    %c0_i32_0 = arith.constant 0 : i32
    %c0_i32_1 = arith.constant 0 : i32
    return %c0_i32, %c0_i32_0 : i32, i32
  }
  func.func @transform_9(%arg0: i32) -> (i32, i32) {
    %c0_i32 = arith.constant 0 : i32
    %c0_i32_0 = arith.constant 0 : i32
    %c0_i32_1 = arith.constant 0 : i32
    return %c0_i32, %c0_i32_0 : i32, i32
  }
  func.func @transform_10(%arg0: i32) -> (i32, i32, i32) {
    %c0_i32 = arith.constant 0 : i32
    %c0_i32_0 = arith.constant 0 : i32
    %c0_i32_1 = arith.constant 0 : i32
    return %arg0, %c0_i32, %c0_i32_0 : i32, i32, i32
  }
}

</mosaic_0001>

<llo_original>
// kernel: spatially_separable_conv_block.1
$region0: #{spatially_separable_conv_block.1}
  #allocation0 [shape = 'u32[]', space=smem, size = 0x4, offset = 0x4, fixed_abs, tag = 'smem constant byte address 0x4 - core index']
  #allocation1 [shape = 'u32[144,128]{1,0:T(1,128)}', space=vmem, size = 0x12000, scoped, tag = 'internal scratch']
  #allocation2 [shape = 'bf16[12,256]{1,0:T(8,128)(2,1)}', space=vmem, size = 0x2000, scoped, tag = 'scratch operand']
  #allocation3 [shape = 'f32[8,256]{1,0:T(8,128)}', space=vmem, size = 0x2000, scoped, tag = 'scratch operand']
  #allocation4 [shape = 'f32[24,128]{1,0:T(8,128)}', space=vmem, size = 0x3000, scoped, tag = 'scratch operand']
  %s0 = inlined_call_operand.vmem [shape: bf16[2,32,4,18], index: 0, kind: input, shape index: {}]
  %s1 = inlined_call_operand.vmem [shape: bf16[8,12], index: 1, kind: input, shape index: {}]
  %s2 = inlined_call_operand.vmem [shape: f32[8,1], index: 2, kind: input, shape index: {}]
  %s3 = inlined_call_operand.vmem [shape: bf16[8,256], index: 3, kind: input, shape index: {}]
  %s4 = inlined_call_operand.vmem [shape: bf16[8,256], index: 4, kind: input, shape index: {}]
  %s5 = inlined_call_operand.vmem [shape: f32[1,256], index: 5, kind: input, shape index: {}]
  %s6 = inlined_call_operand.vmem [shape: f32[8,24], index: 6, kind: input, shape index: {}]
  %s7 = inlined_call_operand.vmem [shape: f32[8,1], index: 7, kind: input, shape index: {}]
  %s8 = inlined_call_operand.vmem [shape: bf16[8,128], index: 8, kind: input, shape index: {}]
  %s9 = inlined_call_operand.vmem [shape: bf16[8,128], index: 9, kind: input, shape index: {}]
  %s10 = inlined_call_operand.vmem [shape: f32[2,8,128], index: 10, kind: output, shape index: {}]
  %s11 = sld [smem:[#allocation0]]
  $region73: #{spatially_separable_conv_block.1} parent=0
    _
  %s13 = ssub.s32 1, %s11
  %s14 = scalar_select 0, %s13, %s11
  loop: start=0, step=1, limit=4
  $region2: #{spatially_separable_conv_block.1} parent=0 // loop_pre_header
    _
  $region3: #{spatially_separable_conv_block.1} parent=0 // loop_header
    %s16 = sphi 0, %s20
    %p17 = scmp.ge.s32.totalorder %s16, 4
    %s26 = sphi 0, %s28
    %s29 = sphi 0, %s26
    %s30 = sphi 0, %s29
    %s46 = sphi 0, %s30
    %s50 = sphi 0, %s50
    %s52 = sphi 0, %s50
    %s53 = sphi 0, %s52
    %s67 = sphi 0, %s53
    %s71 = sphi 0, %s71
    %s73 = sphi 0, %s71
    %s74 = sphi 0, %s73
    %s88 = sphi 0, %s74
    %s92 = sphi 0, %s92
    %s94 = sphi 0, %s92
    %s95 = sphi 0, %s94
    %s109 = sphi 0, %s95
    %s113 = sphi 0, %s113
    %s115 = sphi 0, %s113
    %s116 = sphi 0, %s115
    %s130 = sphi 0, %s116
    %s134 = sphi 0, %s134
    %s136 = sphi 0, %s134
    %s137 = sphi 0, %s136
    %s151 = sphi 0, %s137
    %s155 = sphi 0, %s155
    %s157 = sphi 0, %s155
    %s158 = sphi 0, %s157
    %s172 = sphi 0, %s158
    %s176 = sphi 0, %s176
    %s178 = sphi 0, %s176
    %s179 = sphi 0, %s178
    %s193 = sphi 0, %s179
    %s197 = sphi 0, %s197
    %s199 = sphi 0, %s197
    %s200 = sphi 0, %s199
    %s214 = sphi 0, %s200
    %s218 = sphi 0, %s218
    %s220 = sphi 0, %s218
    %s221 = sphi 0, %s220
    %s235 = sphi 0, %s221
    %s241 = sphi 0, %s243
    %s244 = sphi 0, %s241
    %s245 = sphi 0, %s244
    %s261 = sphi 0, %s245
  $region4: #{spatially_separable_conv_block.1} parent=0 // loop_header_branch
    %19 = sbr.rel (%p17) target = $region8
  $region5: #{spatially_separable_conv_block.1} parent=0 // loop_body
    %s21 = ssub.s32 %s16, 1
    %s22 = ssub.s32 %s16, 2
    %s23 = sadd.s32 %s16, 1
    %s24 = ssub.s32 %s16, %s23
    %p25 = scmp.eq.s32.totalorder %s24, 0
    %s27 = sadd.s32 %s26, 1
    %s28 = scalar_select %p25, %s26, %s27
    %p31 = pneg %p25
    %p32 = scmp.eq.s32.totalorder %s16, 1
    %p33 = por %p31, %p32
    %p34 = scmp.ne.s32.totalorder %s26, %s29
    %p35 = scmp.eq.s32.totalorder %s16, 0
    %p36 = por %p34, %p35
    %p37 = scmp.ne.s32.totalorder %s26, %s29
    %p38 = scmp.eq.s32.totalorder %s21, 1
    %p39 = por %p37, %p38
    %p40 = scmp.ne.s32.totalorder %s29, %s30
    %p41 = scmp.eq.s32.totalorder %s21, 0
    %p42 = por %p40, %p41
    %p43 = scmp.ne.s32.totalorder %s29, %s30
    %p44 = scmp.eq.s32.totalorder %s22, 1
    %p45 = por %p43, %p44
    %p47 = scmp.ne.s32.totalorder %s30, %s46
    %p48 = scmp.eq.s32.totalorder %s22, 0
    %p49 = por %p47, %p48
    %s51 = sadd.s32 %s50, 1
    %p54 = scmp.eq.s32.totalorder %s16, 1
    %p55 = scmp.ne.s32.totalorder %s50, %s52
    %p56 = scmp.eq.s32.totalorder %s16, 0
    %p57 = por %p55, %p56
    %p58 = scmp.ne.s32.totalorder %s50, %s52
    %p59 = scmp.eq.s32.totalorder %s21, 1
    %p60 = por %p58, %p59
    %p61 = scmp.ne.s32.totalorder %s52, %s53
    %p62 = scmp.eq.s32.totalorder %s21, 0
    %p63 = por %p61, %p62
    %p64 = scmp.ne.s32.totalorder %s52, %s53
    %p65 = scmp.eq.s32.totalorder %s22, 1
    %p66 = por %p64, %p65
    %p68 = scmp.ne.s32.totalorder %s53, %s67
    %p69 = scmp.eq.s32.totalorder %s22, 0
    %p70 = por %p68, %p69
    %s72 = sadd.s32 %s71, 1
    %p75 = scmp.eq.s32.totalorder %s16, 1
    %p76 = scmp.ne.s32.totalorder %s71, %s73
    %p77 = scmp.eq.s32.totalorder %s16, 0
    %p78 = por %p76, %p77
    %p79 = scmp.ne.s32.totalorder %s71, %s73
    %p80 = scmp.eq.s32.totalorder %s21, 1
    %p81 = por %p79, %p80
    %p82 = scmp.ne.s32.totalorder %s73, %s74
    %p83 = scmp.eq.s32.totalorder %s21, 0
    %p84 = por %p82, %p83
    %p85 = scmp.ne.s32.totalorder %s73, %s74
    %p86 = scmp.eq.s32.totalorder %s22, 1
    %p87 = por %p85, %p86
    %p89 = scmp.ne.s32.totalorder %s74, %s88
    %p90 = scmp.eq.s32.totalorder %s22, 0
    %p91 = por %p89, %p90
    %s93 = sadd.s32 %s92, 1
    %p96 = scmp.eq.s32.totalorder %s16, 1
    %p97 = scmp.ne.s32.totalorder %s92, %s94
    %p98 = scmp.eq.s32.totalorder %s16, 0
    %p99 = por %p97, %p98
    %p100 = scmp.ne.s32.totalorder %s92, %s94
    %p101 = scmp.eq.s32.totalorder %s21, 1
    %p102 = por %p100, %p101
    %p103 = scmp.ne.s32.totalorder %s94, %s95
    %p104 = scmp.eq.s32.totalorder %s21, 0
    %p105 = por %p103, %p104
    %p106 = scmp.ne.s32.totalorder %s94, %s95
    %p107 = scmp.eq.s32.totalorder %s22, 1
    %p108 = por %p106, %p107
    %p110 = scmp.ne.s32.totalorder %s95, %s109
    %p111 = scmp.eq.s32.totalorder %s22, 0
    %p112 = por %p110, %p111
    %s114 = sadd.s32 %s113, 1
    %p117 = scmp.eq.s32.totalorder %s16, 1
    %p118 = scmp.ne.s32.totalorder %s113, %s115
    %p119 = scmp.eq.s32.totalorder %s16, 0
    %p120 = por %p118, %p119
    %p121 = scmp.ne.s32.totalorder %s113, %s115
    %p122 = scmp.eq.s32.totalorder %s21, 1
    %p123 = por %p121, %p122
    %p124 = scmp.ne.s32.totalorder %s115, %s116
    %p125 = scmp.eq.s32.totalorder %s21, 0
    %p126 = por %p124, %p125
    %p127 = scmp.ne.s32.totalorder %s115, %s116
    %p128 = scmp.eq.s32.totalorder %s22, 1
    %p129 = por %p127, %p128
    %p131 = scmp.ne.s32.totalorder %s116, %s130
    %p132 = scmp.eq.s32.totalorder %s22, 0
    %p133 = por %p131, %p132
    %s135 = sadd.s32 %s134, 1
    %p138 = scmp.eq.s32.totalorder %s16, 1
    %p139 = scmp.ne.s32.totalorder %s134, %s136
    %p140 = scmp.eq.s32.totalorder %s16, 0
    %p141 = por %p139, %p140
    %p142 = scmp.ne.s32.totalorder %s134, %s136
    %p143 = scmp.eq.s32.totalorder %s21, 1
    %p144 = por %p142, %p143
    %p145 = scmp.ne.s32.totalorder %s136, %s137
    %p146 = scmp.eq.s32.totalorder %s21, 0
    %p147 = por %p145, %p146
    %p148 = scmp.ne.s32.totalorder %s136, %s137
    %p149 = scmp.eq.s32.totalorder %s22, 1
    %p150 = por %p148, %p149
    %p152 = scmp.ne.s32.totalorder %s137, %s151
    %p153 = scmp.eq.s32.totalorder %s22, 0
    %p154 = por %p152, %p153
    %s156 = sadd.s32 %s155, 1
    %p159 = scmp.eq.s32.totalorder %s16, 1
    %p160 = scmp.ne.s32.totalorder %s155, %s157
    %p161 = scmp.eq.s32.totalorder %s16, 0
    %p162 = por %p160, %p161
    %p163 = scmp.ne.s32.totalorder %s155, %s157
    %p164 = scmp.eq.s32.totalorder %s21, 1
    %p165 = por %p163, %p164
    %p166 = scmp.ne.s32.totalorder %s157, %s158
    %p167 = scmp.eq.s32.totalorder %s21, 0
    %p168 = por %p166, %p167
    %p169 = scmp.ne.s32.totalorder %s157, %s158
    %p170 = scmp.eq.s32.totalorder %s22, 1
    %p171 = por %p169, %p170
    %p173 = scmp.ne.s32.totalorder %s158, %s172
    %p174 = scmp.eq.s32.totalorder %s22, 0
    %p175 = por %p173, %p174
    %s177 = sadd.s32 %s176, 1
    %p180 = scmp.eq.s32.totalorder %s16, 1
    %p181 = scmp.ne.s32.totalorder %s176, %s178
    %p182 = scmp.eq.s32.totalorder %s16, 0
    %p183 = por %p181, %p182
    %p184 = scmp.ne.s32.totalorder %s176, %s178
    %p185 = scmp.eq.s32.totalorder %s21, 1
    %p186 = por %p184, %p185
    %p187 = scmp.ne.s32.totalorder %s178, %s179
    %p188 = scmp.eq.s32.totalorder %s21, 0
    %p189 = por %p187, %p188
    %p190 = scmp.ne.s32.totalorder %s178, %s179
    %p191 = scmp.eq.s32.totalorder %s22, 1
    %p192 = por %p190, %p191
    %p194 = scmp.ne.s32.totalorder %s179, %s193
    %p195 = scmp.eq.s32.totalorder %s22, 0
    %p196 = por %p194, %p195
    %s198 = sadd.s32 %s197, 1
    %p201 = scmp.eq.s32.totalorder %s16, 1
    %p202 = scmp.ne.s32.totalorder %s197, %s199
    %p203 = scmp.eq.s32.totalorder %s16, 0
    %p204 = por %p202, %p203
    %p205 = scmp.ne.s32.totalorder %s197, %s199
    %p206 = scmp.eq.s32.totalorder %s21, 1
    %p207 = por %p205, %p206
    %p208 = scmp.ne.s32.totalorder %s199, %s200
    %p209 = scmp.eq.s32.totalorder %s21, 0
    %p210 = por %p208, %p209
    %p211 = scmp.ne.s32.totalorder %s199, %s200
    %p212 = scmp.eq.s32.totalorder %s22, 1
    %p213 = por %p211, %p212
    %p215 = scmp.ne.s32.totalorder %s200, %s214
    %p216 = scmp.eq.s32.totalorder %s22, 0
    %p217 = por %p215, %p216
    %s219 = sadd.s32 %s218, 1
    %p222 = scmp.eq.s32.totalorder %s16, 1
    %p223 = scmp.ne.s32.totalorder %s218, %s220
    %p224 = scmp.eq.s32.totalorder %s16, 0
    %p225 = por %p223, %p224
    %p226 = scmp.ne.s32.totalorder %s218, %s220
    %p227 = scmp.eq.s32.totalorder %s21, 1
    %p228 = por %p226, %p227
    %p229 = scmp.ne.s32.totalorder %s220, %s221
    %p230 = scmp.eq.s32.totalorder %s21, 0
    %p231 = por %p229, %p230
    %p232 = scmp.ne.s32.totalorder %s220, %s221
    %p233 = scmp.eq.s32.totalorder %s22, 1
    %p234 = por %p232, %p233
    %p236 = scmp.ne.s32.totalorder %s221, %s235
    %p237 = scmp.eq.s32.totalorder %s22, 0
    %p238 = por %p236, %p237
    %s239 = ssub.s32 %s16, %s23
    %p240 = scmp.eq.s32.totalorder %s239, 0
    %s242 = sadd.s32 %s241, 1
    %s243 = scalar_select %p240, %s241, %s242
    %p246 = pneg %p240
    %p247 = scmp.eq.s32.totalorder %s16, 1
    %p248 = por %p246, %p247
    %p249 = scmp.ne.s32.totalorder %s241, %s244
    %p250 = scmp.eq.s32.totalorder %s16, 0
    %p251 = por %p249, %p250
    %p252 = scmp.ne.s32.totalorder %s241, %s244
    %p253 = scmp.eq.s32.totalorder %s21, 1
    %p254 = por %p252, %p253
    %p255 = scmp.ne.s32.totalorder %s244, %s245
    %p256 = scmp.eq.s32.totalorder %s21, 0
    %p257 = por %p255, %p256
    %p258 = scmp.ne.s32.totalorder %s244, %s245
    %p259 = scmp.eq.s32.totalorder %s22, 1
    %p260 = por %p258, %p259
    %p262 = scmp.ne.s32.totalorder %s245, %s261
    %p263 = scmp.eq.s32.totalorder %s22, 0
    %p264 = por %p262, %p263
    %p265 = scmp.le.s32.totalorder 1, %s16
    %p266 = scmp.lt.s32.totalorder %s16, 3
    %p267 = pnand %p265, %p266
    %p268 = pneg %p267
    // Predicated region
    $region9: #{spatially_separable_conv_block.1} parent=5 // pred_check
      _
    $region10: #{spatially_separable_conv_block.1} parent=5 // pred_check_branch
      %270 = sbr.rel (%p267) target = $region12
    $region11: #{spatially_separable_conv_block.1} parent=5 // pred_region
      %s271 = ssub.s32 %s16, 1
      // Predicated region
      $region13: #{spatially_separable_conv_block.1} parent=11 // pred_check
        %p272 = pneg %p63
      $region14: #{spatially_separable_conv_block.1} parent=11 // pred_check_branch
        %274 = sbr.rel (%p272) target = $region16
      $region15: #{spatially_separable_conv_block.1} parent=11 // pred_region
        _
      $region16: #{spatially_separable_conv_block.1} parent=11 // pred_fallthru
        _
      // Predicated region
      $region17: #{spatially_separable_conv_block.1} parent=11 // pred_check
        %p275 = pneg %p84
      $region18: #{spatially_separable_conv_block.1} parent=11 // pred_check_branch
        %277 = sbr.rel (%p275) target = $region20
      $region19: #{spatially_separable_conv_block.1} parent=11 // pred_region
        _
      $region20: #{spatially_separable_conv_block.1} parent=11 // pred_fallthru
        _
      // Predicated region
      $region21: #{spatially_separable_conv_block.1} parent=11 // pred_check
        %p278 = pneg %p105
      $region22: #{spatially_separable_conv_block.1} parent=11 // pred_check_branch
        %280 = sbr.rel (%p278) target = $region24
      $region23: #{spatially_separable_conv_block.1} parent=11 // pred_region
        _
      $region24: #{spatially_separable_conv_block.1} parent=11 // pred_fallthru
        _
      // Predicated region
      $region25: #{spatially_separable_conv_block.1} parent=11 // pred_check
        %p281 = pneg %p126
      $region26: #{spatially_separable_conv_block.1} parent=11 // pred_check_branch
        %283 = sbr.rel (%p281) target = $region28
      $region27: #{spatially_separable_conv_block.1} parent=11 // pred_region
        _
      $region28: #{spatially_separable_conv_block.1} parent=11 // pred_fallthru
        _
      // Predicated region
      $region29: #{spatially_separable_conv_block.1} parent=11 // pred_check
        %p284 = pneg %p147
      $region30: #{spatially_separable_conv_block.1} parent=11 // pred_check_branch
        %286 = sbr.rel (%p284) target = $region32
      $region31: #{spatially_separable_conv_block.1} parent=11 // pred_region
        _
      $region32: #{spatially_separable_conv_block.1} parent=11 // pred_fallthru
        _
      // Predicated region
      $region33: #{spatially_separable_conv_block.1} parent=11 // pred_check
        %p287 = pneg %p168
      $region34: #{spatially_separable_conv_block.1} parent=11 // pred_check_branch
        %289 = sbr.rel (%p287) target = $region36
      $region35: #{spatially_separable_conv_block.1} parent=11 // pred_region
        _
      $region36: #{spatially_separable_conv_block.1} parent=11 // pred_fallthru
        _
      // Predicated region
      $region37: #{spatially_separable_conv_block.1} parent=11 // pred_check
        %p290 = pneg %p189
      $region38: #{spatially_separable_conv_block.1} parent=11 // pred_check_branch
        %292 = sbr.rel (%p290) target = $region40
      $region39: #{spatially_separable_conv_block.1} parent=11 // pred_region
        _
      $region40: #{spatially_separable_conv_block.1} parent=11 // pred_fallthru
        _
      // Predicated region
      $region41: #{spatially_separable_conv_block.1} parent=11 // pred_check
        %p293 = pneg %p210
      $region42: #{spatially_separable_conv_block.1} parent=11 // pred_check_branch
        %295 = sbr.rel (%p293) target = $region44
      $region43: #{spatially_separable_conv_block.1} parent=11 // pred_region
        _
      $region44: #{spatially_separable_conv_block.1} parent=11 // pred_fallthru
        _
      // Predicated region
      $region45: #{spatially_separable_conv_block.1} parent=11 // pred_check
        %p296 = pneg %p231
      $region46: #{spatially_separable_conv_block.1} parent=11 // pred_check_branch
        %298 = sbr.rel (%p296) target = $region48
      $region47: #{spatially_separable_conv_block.1} parent=11 // pred_region
        _
      $region48: #{spatially_separable_conv_block.1} parent=11 // pred_fallthru
        _
    $region12: #{spatially_separable_conv_block.1} parent=5 // pred_fallthru
      _
    %p299 = scmp.lt.s32.totalorder %s16, 2
    // Predicated region
    $region49: #{spatially_separable_conv_block.1} parent=5 // pred_check
      %p300 = pneg %p299
    $region50: #{spatially_separable_conv_block.1} parent=5 // pred_check_branch
      %302 = sbr.rel (%p300) target = $region52
    $region51: #{spatially_separable_conv_block.1} parent=5 // pred_region
      // Predicated region
      $region53: #{spatially_separable_conv_block.1} parent=51 // pred_check
        %p303 = pneg %p36
      $region54: #{spatially_separable_conv_block.1} parent=51 // pred_check_branch
        %305 = sbr.rel (%p303) target = $region56
      $region55: #{spatially_separable_conv_block.1} parent=51 // pred_region
        %p306 = scmp.lt.s32.totalorder %s16, 1
        %s307 = scalar_select %p306, %s16, 1
        %s308 = smul.addr %s307, 32
        %s309 = smul.addr %s308, 2
        %s310 = scalar_lea.vmem %s0, %s309
      $region56: #{spatially_separable_conv_block.1} parent=51 // pred_fallthru
        _
    $region52: #{spatially_separable_conv_block.1} parent=5 // pred_fallthru
      _
    %p311 = scmp.le.s32.totalorder 1, %s16
    %p312 = scmp.lt.s32.totalorder %s16, 3
    %p313 = pnand %p311, %p312
    %p314 = pneg %p313
    // Predicated region
    $region57: #{spatially_separable_conv_block.1} parent=5 // pred_check
      _
    $region58: #{spatially_separable_conv_block.1} parent=5 // pred_check_branch
      %316 = sbr.rel (%p313) target = $region60
    $region59: #{spatially_separable_conv_block.1} parent=5 // pred_region
      %s317 = ssub.s32 %s16, 1
      %p318 = scmp.lt.s32.totalorder %s21, 1
      %s319 = scalar_select %p318, %s21, 1
      %s320 = smul.addr %s319, 32
      %s321 = smul.addr %s320, 2
      %s322 = scalar_lea.vmem %s0, %s321
      %p323 = pneg %p42
      %p324 = pneg %p39
      %p325 = pneg %p63
      %p326 = pneg %p60
      %p327 = pneg %p84
      %p328 = pneg %p81
      %p329 = pneg %p105
      %p330 = pneg %p102
      %p331 = pneg %p126
      %p332 = pneg %p123
      %p333 = pneg %p147
      %p334 = pneg %p144
      %p335 = pneg %p168
      %p336 = pneg %p165
      %p337 = pneg %p189
      %p338 = pneg %p186
      %p339 = pneg %p210
      %p340 = pneg %p207
      %p341 = pneg %p231
      %p342 = pneg %p228
      %p343 = pneg %p257
      %p344 = pneg %p254
      %p345 = scmp.lt.s32.totalorder %s21, 1
      %s346 = scalar_select %p345, %s21, 1
      %s347 = smul.addr %s346, 8
      %s348 = scalar_lea.vmem %s10, %s347
      %p349 = scmp.lt.s32.totalorder %s21, 1
      %s350 = scalar_select %p349, %s21, 1
      %s351 = smul.addr %s350, 32
      %s352 = smul.addr %s351, 2
      %s353 = scalar_lea.vmem %s0, %s352
      %p354 = scmp.lt.s32.totalorder %s21, 1
      %s355 = scalar_select %p354, %s21, 1
      %s356 = smul.addr %s355, 8
      %s357 = scalar_lea.vmem %s10, %s356
      %v359 = vld [vmem:[%s353] sm:$0x3]
      %vm360 = vcmask 58368
      %361 = vst.msk [vmem:[#allocation2] sm:$0x3] %vm360, %v359
      %v363 = vcombine.low %v359, %v359
      %v365 = vunpack.c.l.s4 1983009808
      %v366 = vunpack.c.0.s8 %v365
      %v367 = vlaneseq
      %v368 = vshrl.u32 %v367, 7
      %v369 = vsub.s32 %v366, %v368
      %v370 = vrot.slane %v363, %v369
      %371 = vrot.lane.b32.xlu0 %v370, 119
      %v372 = vpop.permute.xlu0 %371
      %vm374 = vcmask 60418
      %375 = vst.msk [vmem:[#allocation2] sm:$0xc] %vm374, %v372
      %v377 = vunpack.c.l.s4 1983009808
      %v378 = vunpack.c.0.s8 %v377
      %v379 = vlaneseq
      %v380 = vshrl.u32 %v379, 7
      %v381 = vsub.s32 %v378, %v380
      %v382 = vrot.slane %v359, %v381
      %383 = vrot.lane.b32.xlu0 %v382, 127
      %v384 = vpop.permute.xlu0 %383
      %386 = vst.msk [vmem:[#allocation2 + $0x8] sm:$0x3] %vm360, %v384
      %s387 = scalar_lea.vmem %s353, 2
      %v388 = vld [vmem:[%s387] sm:$0x3]
      %v391 = vunpack.c.l.s4 1983009808
      %v392 = vunpack.c.0.s8 %v391
      %v393 = vlaneseq
      %v394 = vshrl.u32 %v393, 7
      %v395 = vsub.s32 %v392, %v394
      %v396 = vrot.slane %v388, %v395
      %397 = vrot.lane.b32.xlu0 %v396, 8
      %v398 = vpop.permute.xlu0 %397
      %vm400 = vcmask 123968
      %401 = vst.msk [vmem:[#allocation2] sm:$0x3] %vm400, %v398
      %v402 = vcombine.low %v388, %v388
      %v404 = vunpack.c.l.s4 1983009808
      %v405 = vunpack.c.0.s8 %v404
      %v406 = vlaneseq
      %v407 = vshrl.u32 %v406, 7
      %v408 = vsub.s32 %v405, %v407
      %v409 = vrot.slane %v402, %v408
      %410 = vrot.lane.b32.xlu0 %v409, 127
      %v411 = vpop.permute.xlu0 %410
      %vm413 = vcmask 126018
      %414 = vst.msk [vmem:[#allocation2] sm:$0xc] %vm413, %v411
      %415 = vrot.lane.b32.xlu0 %v396, 7
      %v416 = vpop.permute.xlu0 %415
      %418 = vst.msk [vmem:[#allocation2 + $0x8] sm:$0x3] %vm400, %v416
      %s419 = scalar_lea.vmem %s353, 4
      %v420 = vld [vmem:[%s419] sm:$0x3]
      %v423 = vunpack.c.l.s4 1983009808
      %v424 = vunpack.c.0.s8 %v423
      %v425 = vlaneseq
      %v426 = vshrl.u32 %v425, 7
      %v427 = vsub.s32 %v424, %v426
      %v428 = vrot.slane %v420, %v427
      %429 = vrot.lane.b32.xlu0 %v428, 16
      %v430 = vpop.permute.xlu0 %429
      %vm432 = vcmask 189568
      %433 = vst.msk [vmem:[#allocation2] sm:$0x3] %vm432, %v430
      %v434 = vcombine.low %v420, %v420
      %v436 = vunpack.c.l.s4 1983009808
      %v437 = vunpack.c.0.s8 %v436
      %v438 = vlaneseq
      %v439 = vshrl.u32 %v438, 7
      %v440 = vsub.s32 %v437, %v439
      %v441 = vrot.slane %v434, %v440
      %442 = vrot.lane.b32.xlu0 %v441, 7
      %v443 = vpop.permute.xlu0 %442
      %vm445 = vcmask 191618
      %446 = vst.msk [vmem:[#allocation2] sm:$0xc] %vm445, %v443
      %447 = vrot.lane.b32.xlu0 %v428, 15
      %v448 = vpop.permute.xlu0 %447
      %450 = vst.msk [vmem:[#allocation2 + $0x8] sm:$0x3] %vm432, %v448
      %s451 = scalar_lea.vmem %s353, 6
      %v452 = vld [vmem:[%s451] sm:$0x3]
      %v455 = vunpack.c.l.s4 1983009808
      %v456 = vunpack.c.0.s8 %v455
      %v457 = vlaneseq
      %v458 = vshrl.u32 %v457, 7
      %v459 = vsub.s32 %v456, %v458
      %v460 = vrot.slane %v452, %v459
      %461 = vrot.lane.b32.xlu0 %v460, 24
      %v462 = vpop.permute.xlu0 %461
      %vm464 = vcmask 255168
      %465 = vst.msk [vmem:[#allocation2] sm:$0x3] %vm464, %v462
      %v466 = vcombine.low %v452, %v452
      %v468 = vunpack.c.l.s4 1983009808
      %v469 = vunpack.c.0.s8 %v468
      %v470 = vlaneseq
      %v471 = vshrl.u32 %v470, 7
      %v472 = vsub.s32 %v469, %v471
      %v473 = vrot.slane %v466, %v472
      %474 = vrot.lane.b32.xlu0 %v473, 15
      %v475 = vpop.permute.xlu0 %474
      %vm477 = vcmask 257218
      %478 = vst.msk [vmem:[#allocation2] sm:$0xc] %vm477, %v475
      %479 = vrot.lane.b32.xlu0 %v460, 23
      %v480 = vpop.permute.xlu0 %479
      %482 = vst.msk [vmem:[#allocation2 + $0x8] sm:$0x3] %vm464, %v480
      %s483 = scalar_lea.vmem %s353, 8
      %v484 = vld [vmem:[%s483] sm:$0x3]
      %v487 = vunpack.c.l.s4 1983009808
      %v488 = vunpack.c.0.s8 %v487
      %v489 = vlaneseq
      %v490 = vshrl.u32 %v489, 7
      %v491 = vsub.s32 %v488, %v490
      %v492 = vrot.slane %v484, %v491
      %493 = vrot.lane.b32.xlu0 %v492, 32
      %v494 = vpop.permute.xlu0 %493
      %vm496 = vcmask 320768
      %497 = vst.msk [vmem:[#allocation2] sm:$0x3] %vm496, %v494
      %v498 = vcombine.low %v484, %v484
      %v500 = vunpack.c.l.s4 1983009808
      %v501 = vunpack.c.0.s8 %v500
      %v502 = vlaneseq
      %v503 = vshrl.u32 %v502, 7
      %v504 = vsub.s32 %v501, %v503
      %v505 = vrot.slane %v498, %v504
      %506 = vrot.lane.b32.xlu0 %v505, 23
      %v507 = vpop.permute.xlu0 %506
      %vm509 = vcmask 322818
      %510 = vst.msk [vmem:[#allocation2] sm:$0xc] %vm509, %v507
      %511 = vrot.lane.b32.xlu0 %v492, 31
      %v512 = vpop.permute.xlu0 %511
      %514 = vst.msk [vmem:[#allocation2 + $0x8] sm:$0x3] %vm496, %v512
      %s515 = scalar_lea.vmem %s353, 10
      %v516 = vld [vmem:[%s515] sm:$0x3]
      %v519 = vunpack.c.l.s4 1983009808
      %v520 = vunpack.c.0.s8 %v519
      %v521 = vlaneseq
      %v522 = vshrl.u32 %v521, 7
      %v523 = vsub.s32 %v520, %v522
      %v524 = vrot.slane %v516, %v523
      %525 = vrot.lane.b32.xlu0 %v524, 40
      %v526 = vpop.permute.xlu0 %525
      %vm528 = vcmask 386368
      %529 = vst.msk [vmem:[#allocation2] sm:$0x3] %vm528, %v526
      %v530 = vcombine.low %v516, %v516
      %v532 = vunpack.c.l.s4 1983009808
      %v533 = vunpack.c.0.s8 %v532
      %v534 = vlaneseq
      %v535 = vshrl.u32 %v534, 7
      %v536 = vsub.s32 %v533, %v535
      %v537 = vrot.slane %v530, %v536
      %538 = vrot.lane.b32.xlu0 %v537, 31
      %v539 = vpop.permute.xlu0 %538
      %vm541 = vcmask 388418
      %542 = vst.msk [vmem:[#allocation2] sm:$0xc] %vm541, %v539
      %543 = vrot.lane.b32.xlu0 %v524, 39
      %v544 = vpop.permute.xlu0 %543
      %546 = vst.msk [vmem:[#allocation2 + $0x8] sm:$0x3] %vm528, %v544
      %s547 = scalar_lea.vmem %s353, 12
      %v548 = vld [vmem:[%s547] sm:$0x3]
      %v551 = vunpack.c.l.s4 1983009808
      %v552 = vunpack.c.0.s8 %v551
      %v553 = vlaneseq
      %v554 = vshrl.u32 %v553, 7
      %v555 = vsub.s32 %v552, %v554
      %v556 = vrot.slane %v548, %v555
      %557 = vrot.lane.b32.xlu0 %v556, 48
      %v558 = vpop.permute.xlu0 %557
      %vm560 = vcmask 451968
      %561 = vst.msk [vmem:[#allocation2] sm:$0x3] %vm560, %v558
      %v562 = vcombine.low %v548, %v548
      %v564 = vunpack.c.l.s4 1983009808
      %v565 = vunpack.c.0.s8 %v564
      %v566 = vlaneseq
      %v567 = vshrl.u32 %v566, 7
      %v568 = vsub.s32 %v565, %v567
      %v569 = vrot.slane %v562, %v568
      %570 = vrot.lane.b32.xlu0 %v569, 39
      %v571 = vpop.permute.xlu0 %570
      %vm573 = vcmask 454018
      %574 = vst.msk [vmem:[#allocation2] sm:$0xc] %vm573, %v571
      %575 = vrot.lane.b32.xlu0 %v556, 47
      %v576 = vpop.permute.xlu0 %575
      %578 = vst.msk [vmem:[#allocation2 + $0x8] sm:$0x3] %vm560, %v576
      %s579 = scalar_lea.vmem %s353, 14
      %v580 = vld [vmem:[%s579] sm:$0x3]
      %v583 = vunpack.c.l.s4 1983009808
      %v584 = vunpack.c.0.s8 %v583
      %v585 = vlaneseq
      %v586 = vshrl.u32 %v585, 7
      %v587 = vsub.s32 %v584, %v586
      %v588 = vrot.slane %v580, %v587
      %589 = vrot.lane.b32.xlu0 %v588, 56
      %v590 = vpop.permute.xlu0 %589
      %vm592 = vcmask 517568
      %593 = vst.msk [vmem:[#allocation2] sm:$0x3] %vm592, %v590
      %v594 = vcombine.low %v580, %v580
      %v596 = vunpack.c.l.s4 1983009808
      %v597 = vunpack.c.0.s8 %v596
      %v598 = vlaneseq
      %v599 = vshrl.u32 %v598, 7
      %v600 = vsub.s32 %v597, %v599
      %v601 = vrot.slane %v594, %v600
      %602 = vrot.lane.b32.xlu0 %v601, 47
      %v603 = vpop.permute.xlu0 %602
      %vm605 = vcmask 519618
      %606 = vst.msk [vmem:[#allocation2] sm:$0xc] %vm605, %v603
      %607 = vrot.lane.b32.xlu0 %v588, 55
      %v608 = vpop.permute.xlu0 %607
      %610 = vst.msk [vmem:[#allocation2 + $0x8] sm:$0x3] %vm592, %v608
      %s611 = scalar_lea.vmem %s353, 16
      %v612 = vld [vmem:[%s611] sm:$0x3]
      %v615 = vunpack.c.l.s4 1983009808
      %v616 = vunpack.c.0.s8 %v615
      %v617 = vlaneseq
      %v618 = vshrl.u32 %v617, 7
      %v619 = vsub.s32 %v616, %v618
      %v620 = vrot.slane %v612, %v619
      %621 = vrot.lane.b32.xlu0 %v620, 64
      %v622 = vpop.permute.xlu0 %621
      %vm624 = vcmask 583168
      %625 = vst.msk [vmem:[#allocation2] sm:$0x3] %vm624, %v622
      %v626 = vcombine.low %v612, %v612
      %v628 = vunpack.c.l.s4 1983009808
      %v629 = vunpack.c.0.s8 %v628
      %v630 = vlaneseq
      %v631 = vshrl.u32 %v630, 7
      %v632 = vsub.s32 %v629, %v631
      %v633 = vrot.slane %v626, %v632
      %634 = vrot.lane.b32.xlu0 %v633, 55
      %v635 = vpop.permute.xlu0 %634
      %vm637 = vcmask 585218
      %638 = vst.msk [vmem:[#allocation2] sm:$0xc] %vm637, %v635
      %639 = vrot.lane.b32.xlu0 %v620, 63
      %v640 = vpop.permute.xlu0 %639
      %642 = vst.msk [vmem:[#allocation2 + $0x8] sm:$0x3] %vm624, %v640
      %s643 = scalar_lea.vmem %s353, 18
      %v644 = vld [vmem:[%s643] sm:$0x3]
      %v647 = vunpack.c.l.s4 1983009808
      %v648 = vunpack.c.0.s8 %v647
      %v649 = vlaneseq
      %v650 = vshrl.u32 %v649, 7
      %v651 = vsub.s32 %v648, %v650
      %v652 = vrot.slane %v644, %v651
      %653 = vrot.lane.b32.xlu0 %v652, 72
      %v654 = vpop.permute.xlu0 %653
      %vm656 = vcmask 648768
      %657 = vst.msk [vmem:[#allocation2] sm:$0x3] %vm656, %v654
      %v658 = vcombine.low %v644, %v644
      %v660 = vunpack.c.l.s4 1983009808
      %v661 = vunpack.c.0.s8 %v660
      %v662 = vlaneseq
      %v663 = vshrl.u32 %v662, 7
      %v664 = vsub.s32 %v661, %v663
      %v665 = vrot.slane %v658, %v664
      %666 = vrot.lane.b32.xlu0 %v665, 63
      %v667 = vpop.permute.xlu0 %666
      %vm669 = vcmask 650818
      %670 = vst.msk [vmem:[#allocation2] sm:$0xc] %vm669, %v667
      %671 = vrot.lane.b32.xlu0 %v652, 71
      %v672 = vpop.permute.xlu0 %671
      %674 = vst.msk [vmem:[#allocation2 + $0x8] sm:$0x3] %vm656, %v672
      %s675 = scalar_lea.vmem %s353, 20
      %v676 = vld [vmem:[%s675] sm:$0x3]
      %v679 = vunpack.c.l.s4 1983009808
      %v680 = vunpack.c.0.s8 %v679
      %v681 = vlaneseq
      %v682 = vshrl.u32 %v681, 7
      %v683 = vsub.s32 %v680, %v682
      %v684 = vrot.slane %v676, %v683
      %685 = vrot.lane.b32.xlu0 %v684, 80
      %v686 = vpop.permute.xlu0 %685
      %vm688 = vcmask 714368
      %689 = vst.msk [vmem:[#allocation2] sm:$0x3] %vm688, %v686
      %v690 = vcombine.low %v676, %v676
      %v692 = vunpack.c.l.s4 1983009808
      %v693 = vunpack.c.0.s8 %v692
      %v694 = vlaneseq
      %v695 = vshrl.u32 %v694, 7
      %v696 = vsub.s32 %v693, %v695
      %v697 = vrot.slane %v690, %v696
      %698 = vrot.lane.b32.xlu0 %v697, 71
      %v699 = vpop.permute.xlu0 %698
      %vm701 = vcmask 716418
      %702 = vst.msk [vmem:[#allocation2] sm:$0xc] %vm701, %v699
      %703 = vrot.lane.b32.xlu0 %v684, 79
      %v704 = vpop.permute.xlu0 %703
      %706 = vst.msk [vmem:[#allocation2 + $0x8] sm:$0x3] %vm688, %v704
      %s707 = scalar_lea.vmem %s353, 22
      %v708 = vld [vmem:[%s707] sm:$0x3]
      %v711 = vunpack.c.l.s4 1983009808
      %v712 = vunpack.c.0.s8 %v711
      %v713 = vlaneseq
      %v714 = vshrl.u32 %v713, 7
      %v715 = vsub.s32 %v712, %v714
      %v716 = vrot.slane %v708, %v715
      %717 = vrot.lane.b32.xlu0 %v716, 88
      %v718 = vpop.permute.xlu0 %717
      %vm720 = vcmask 779968
      %721 = vst.msk [vmem:[#allocation2] sm:$0x3] %vm720, %v718
      %v722 = vcombine.low %v708, %v708
      %v724 = vunpack.c.l.s4 1983009808
      %v725 = vunpack.c.0.s8 %v724
      %v726 = vlaneseq
      %v727 = vshrl.u32 %v726, 7
      %v728 = vsub.s32 %v725, %v727
      %v729 = vrot.slane %v722, %v728
      %730 = vrot.lane.b32.xlu0 %v729, 79
      %v731 = vpop.permute.xlu0 %730
      %vm733 = vcmask 782018
      %734 = vst.msk [vmem:[#allocation2] sm:$0xc] %vm733, %v731
      %735 = vrot.lane.b32.xlu0 %v716, 87
      %v736 = vpop.permute.xlu0 %735
      %738 = vst.msk [vmem:[#allocation2 + $0x8] sm:$0x3] %vm720, %v736
      %s739 = scalar_lea.vmem %s353, 24
      %v740 = vld [vmem:[%s739] sm:$0x3]
      %v743 = vunpack.c.l.s4 1983009808
      %v744 = vunpack.c.0.s8 %v743
      %v745 = vlaneseq
      %v746 = vshrl.u32 %v745, 7
      %v747 = vsub.s32 %v744, %v746
      %v748 = vrot.slane %v740, %v747
      %749 = vrot.lane.b32.xlu0 %v748, 96
      %v750 = vpop.permute.xlu0 %749
      %vm752 = vcmask 845568
      %753 = vst.msk [vmem:[#allocation2] sm:$0x3] %vm752, %v750
      %v754 = vcombine.low %v740, %v740
      %v756 = vunpack.c.l.s4 1983009808
      %v757 = vunpack.c.0.s8 %v756
      %v758 = vlaneseq
      %v759 = vshrl.u32 %v758, 7
      %v760 = vsub.s32 %v757, %v759
      %v761 = vrot.slane %v754, %v760
      %762 = vrot.lane.b32.xlu0 %v761, 87
      %v763 = vpop.permute.xlu0 %762
      %vm765 = vcmask 847618
      %766 = vst.msk [vmem:[#allocation2] sm:$0xc] %vm765, %v763
      %767 = vrot.lane.b32.xlu0 %v748, 95
      %v768 = vpop.permute.xlu0 %767
      %770 = vst.msk [vmem:[#allocation2 + $0x8] sm:$0x3] %vm752, %v768
      %s771 = scalar_lea.vmem %s353, 26
      %v772 = vld [vmem:[%s771] sm:$0x3]
      %v775 = vunpack.c.l.s4 1983009808
      %v776 = vunpack.c.0.s8 %v775
      %v777 = vlaneseq
      %v778 = vshrl.u32 %v777, 7
      %v779 = vsub.s32 %v776, %v778
      %v780 = vrot.slane %v772, %v779
      %781 = vrot.lane.b32.xlu0 %v780, 104
      %v782 = vpop.permute.xlu0 %781
      %vm784 = vcmask 911168
      %785 = vst.msk [vmem:[#allocation2] sm:$0x3] %vm784, %v782
      %v786 = vcombine.low %v772, %v772
      %v788 = vunpack.c.l.s4 1983009808
      %v789 = vunpack.c.0.s8 %v788
      %v790 = vlaneseq
      %v791 = vshrl.u32 %v790, 7
      %v792 = vsub.s32 %v789, %v791
      %v793 = vrot.slane %v786, %v792
      %794 = vrot.lane.b32.xlu0 %v793, 95
      %v795 = vpop.permute.xlu0 %794
      %vm797 = vcmask 913218
      %798 = vst.msk [vmem:[#allocation2] sm:$0xc] %vm797, %v795
      %799 = vrot.lane.b32.xlu0 %v780, 103
      %v800 = vpop.permute.xlu0 %799
      %802 = vst.msk [vmem:[#allocation2 + $0x8] sm:$0x3] %vm784, %v800
      %s803 = scalar_lea.vmem %s353, 28
      %v804 = vld [vmem:[%s803] sm:$0x3]
      %v807 = vunpack.c.l.s4 1983009808
      %v808 = vunpack.c.0.s8 %v807
      %v809 = vlaneseq
      %v810 = vshrl.u32 %v809, 7
      %v811 = vsub.s32 %v808, %v810
      %v812 = vrot.slane %v804, %v811
      %813 = vrot.lane.b32.xlu0 %v812, 112
      %v814 = vpop.permute.xlu0 %813
      %vm816 = vcmask 976768
      %817 = vst.msk [vmem:[#allocation2] sm:$0x3] %vm816, %v814
      %v818 = vcombine.low %v804, %v804
      %v820 = vunpack.c.l.s4 1983009808
      %v821 = vunpack.c.0.s8 %v820
      %v822 = vlaneseq
      %v823 = vshrl.u32 %v822, 7
      %v824 = vsub.s32 %v821, %v823
      %v825 = vrot.slane %v818, %v824
      %826 = vrot.lane.b32.xlu0 %v825, 103
      %v827 = vpop.permute.xlu0 %826
      %vm829 = vcmask 978818
      %830 = vst.msk [vmem:[#allocation2] sm:$0xc] %vm829, %v827
      %831 = vrot.lane.b32.xlu0 %v812, 111
      %v832 = vpop.permute.xlu0 %831
      %834 = vst.msk [vmem:[#allocation2 + $0x8] sm:$0x3] %vm816, %v832
      %s835 = scalar_lea.vmem %s353, 30
      %v836 = vld [vmem:[%s835] sm:$0x3]
      %v839 = vunpack.c.l.s4 1983009808
      %v840 = vunpack.c.0.s8 %v839
      %v841 = vlaneseq
      %v842 = vshrl.u32 %v841, 7
      %v843 = vsub.s32 %v840, %v842
      %v844 = vrot.slane %v836, %v843
      %845 = vrot.lane.b32.xlu0 %v844, 120
      %v846 = vpop.permute.xlu0 %845
      %vm848 = vcmask 1042368
      %849 = vst.msk [vmem:[#allocation2] sm:$0x3] %vm848, %v846
      %v850 = vcombine.low %v836, %v836
      %v852 = vunpack.c.l.s4 1983009808
      %v853 = vunpack.c.0.s8 %v852
      %v854 = vlaneseq
      %v855 = vshrl.u32 %v854, 7
      %v856 = vsub.s32 %v853, %v855
      %v857 = vrot.slane %v850, %v856
      %858 = vrot.lane.b32.xlu0 %v857, 111
      %v859 = vpop.permute.xlu0 %858
      %vm861 = vcmask 1044418
      %862 = vst.msk [vmem:[#allocation2] sm:$0xc] %vm861, %v859
      %863 = vrot.lane.b32.xlu0 %v844, 119
      %v864 = vpop.permute.xlu0 %863
      %866 = vst.msk [vmem:[#allocation2 + $0x8] sm:$0x3] %vm848, %v864
      %s867 = scalar_lea.vmem %s353, 32
      %v868 = vld [vmem:[%s867] sm:$0x3]
      %869 = vst.msk [vmem:[#allocation2 + $0x4] sm:$0x3] %vm360, %v868
      %v871 = vcombine.low %v868, %v868
      %v873 = vunpack.c.l.s4 1983009808
      %v874 = vunpack.c.0.s8 %v873
      %v875 = vlaneseq
      %v876 = vshrl.u32 %v875, 7
      %v877 = vsub.s32 %v874, %v876
      %v878 = vrot.slane %v871, %v877
      %879 = vrot.lane.b32.xlu0 %v878, 119
      %v880 = vpop.permute.xlu0 %879
      %882 = vst.msk [vmem:[#allocation2 + $0x4] sm:$0xc] %vm374, %v880
      %v884 = vunpack.c.l.s4 1983009808
      %v885 = vunpack.c.0.s8 %v884
      %v886 = vlaneseq
      %v887 = vshrl.u32 %v886, 7
      %v888 = vsub.s32 %v885, %v887
      %v889 = vrot.slane %v868, %v888
      %890 = vrot.lane.b32.xlu0 %v889, 127
      %v891 = vpop.permute.xlu0 %890
      %893 = vst.msk [vmem:[#allocation2 + $0xc] sm:$0x3] %vm360, %v891
      %s894 = scalar_lea.vmem %s353, 34
      %v895 = vld [vmem:[%s894] sm:$0x3]
      %v898 = vunpack.c.l.s4 1983009808
      %v899 = vunpack.c.0.s8 %v898
      %v900 = vlaneseq
      %v901 = vshrl.u32 %v900, 7
      %v902 = vsub.s32 %v899, %v901
      %v903 = vrot.slane %v895, %v902
      %904 = vrot.lane.b32.xlu0 %v903, 8
      %v905 = vpop.permute.xlu0 %904
      %907 = vst.msk [vmem:[#allocation2 + $0x4] sm:$0x3] %vm400, %v905
      %v908 = vcombine.low %v895, %v895
      %v910 = vunpack.c.l.s4 1983009808
      %v911 = vunpack.c.0.s8 %v910
      %v912 = vlaneseq
      %v913 = vshrl.u32 %v912, 7
      %v914 = vsub.s32 %v911, %v913
      %v915 = vrot.slane %v908, %v914
      %916 = vrot.lane.b32.xlu0 %v915, 127
      %v917 = vpop.permute.xlu0 %916
      %919 = vst.msk [vmem:[#allocation2 + $0x4] sm:$0xc] %vm413, %v917
      %920 = vrot.lane.b32.xlu0 %v903, 7
      %v921 = vpop.permute.xlu0 %920
      %923 = vst.msk [vmem:[#allocation2 + $0xc] sm:$0x3] %vm400, %v921
      %s924 = scalar_lea.vmem %s353, 36
      %v925 = vld [vmem:[%s924] sm:$0x3]
      %v928 = vunpack.c.l.s4 1983009808
      %v929 = vunpack.c.0.s8 %v928
      %v930 = vlaneseq
      %v931 = vshrl.u32 %v930, 7
      %v932 = vsub.s32 %v929, %v931
      %v933 = vrot.slane %v925, %v932
      %934 = vrot.lane.b32.xlu0 %v933, 16
      %v935 = vpop.permute.xlu0 %934
      %937 = vst.msk [vmem:[#allocation2 + $0x4] sm:$0x3] %vm432, %v935
      %v938 = vcombine.low %v925, %v925
      %v940 = vunpack.c.l.s4 1983009808
      %v941 = vunpack.c.0.s8 %v940
      %v942 = vlaneseq
      %v943 = vshrl.u32 %v942, 7
      %v944 = vsub.s32 %v941, %v943
      %v945 = vrot.slane %v938, %v944
      %946 = vrot.lane.b32.xlu0 %v945, 7
      %v947 = vpop.permute.xlu0 %946
      %949 = vst.msk [vmem:[#allocation2 + $0x4] sm:$0xc] %vm445, %v947
      %950 = vrot.lane.b32.xlu0 %v933, 15
      %v951 = vpop.permute.xlu0 %950
      %953 = vst.msk [vmem:[#allocation2 + $0xc] sm:$0x3] %vm432, %v951
      %s954 = scalar_lea.vmem %s353, 38
      %v955 = vld [vmem:[%s954] sm:$0x3]
      %v958 = vunpack.c.l.s4 1983009808
      %v959 = vunpack.c.0.s8 %v958
      %v960 = vlaneseq
      %v961 = vshrl.u32 %v960, 7
      %v962 = vsub.s32 %v959, %v961
      %v963 = vrot.slane %v955, %v962
      %964 = vrot.lane.b32.xlu0 %v963, 24
      %v965 = vpop.permute.xlu0 %964
      %967 = vst.msk [vmem:[#allocation2 + $0x4] sm:$0x3] %vm464, %v965
      %v968 = vcombine.low %v955, %v955
      %v970 = vunpack.c.l.s4 1983009808
      %v971 = vunpack.c.0.s8 %v970
      %v972 = vlaneseq
      %v973 = vshrl.u32 %v972, 7
      %v974 = vsub.s32 %v971, %v973
      %v975 = vrot.slane %v968, %v974
      %976 = vrot.lane.b32.xlu0 %v975, 15
      %v977 = vpop.permute.xlu0 %976
      %979 = vst.msk [vmem:[#allocation2 + $0x4] sm:$0xc] %vm477, %v977
      %980 = vrot.lane.b32.xlu0 %v963, 23
      %v981 = vpop.permute.xlu0 %980
      %983 = vst.msk [vmem:[#allocation2 + $0xc] sm:$0x3] %vm464, %v981
      %s984 = scalar_lea.vmem %s353, 40
      %v985 = vld [vmem:[%s984] sm:$0x3]
      %v988 = vunpack.c.l.s4 1983009808
      %v989 = vunpack.c.0.s8 %v988
      %v990 = vlaneseq
      %v991 = vshrl.u32 %v990, 7
      %v992 = vsub.s32 %v989, %v991
      %v993 = vrot.slane %v985, %v992
      %994 = vrot.lane.b32.xlu0 %v993, 32
      %v995 = vpop.permute.xlu0 %994
      %997 = vst.msk [vmem:[#allocation2 + $0x4] sm:$0x3] %vm496, %v995
      %v998 = vcombine.low %v985, %v985
      %v1000 = vunpack.c.l.s4 1983009808
      %v1001 = vunpack.c.0.s8 %v1000
      %v1002 = vlaneseq
      %v1003 = vshrl.u32 %v1002, 7
      %v1004 = vsub.s32 %v1001, %v1003
      %v1005 = vrot.slane %v998, %v1004
      %1006 = vrot.lane.b32.xlu0 %v1005, 23
      %v1007 = vpop.permute.xlu0 %1006
      %1009 = vst.msk [vmem:[#allocation2 + $0x4] sm:$0xc] %vm509, %v1007
      %1010 = vrot.lane.b32.xlu0 %v993, 31
      %v1011 = vpop.permute.xlu0 %1010
      %1013 = vst.msk [vmem:[#allocation2 + $0xc] sm:$0x3] %vm496, %v1011
      %s1014 = scalar_lea.vmem %s353, 42
      %v1015 = vld [vmem:[%s1014] sm:$0x3]
      %v1018 = vunpack.c.l.s4 1983009808
      %v1019 = vunpack.c.0.s8 %v1018
      %v1020 = vlaneseq
      %v1021 = vshrl.u32 %v1020, 7
      %v1022 = vsub.s32 %v1019, %v1021
      %v1023 = vrot.slane %v1015, %v1022
      %1024 = vrot.lane.b32.xlu0 %v1023, 40
      %v1025 = vpop.permute.xlu0 %1024
      %1027 = vst.msk [vmem:[#allocation2 + $0x4] sm:$0x3] %vm528, %v1025
      %v1028 = vcombine.low %v1015, %v1015
      %v1030 = vunpack.c.l.s4 1983009808
      %v1031 = vunpack.c.0.s8 %v1030
      %v1032 = vlaneseq
      %v1033 = vshrl.u32 %v1032, 7
      %v1034 = vsub.s32 %v1031, %v1033
      %v1035 = vrot.slane %v1028, %v1034
      %1036 = vrot.lane.b32.xlu0 %v1035, 31
      %v1037 = vpop.permute.xlu0 %1036
      %1039 = vst.msk [vmem:[#allocation2 + $0x4] sm:$0xc] %vm541, %v1037
      %1040 = vrot.lane.b32.xlu0 %v1023, 39
      %v1041 = vpop.permute.xlu0 %1040
      %1043 = vst.msk [vmem:[#allocation2 + $0xc] sm:$0x3] %vm528, %v1041
      %s1044 = scalar_lea.vmem %s353, 44
      %v1045 = vld [vmem:[%s1044] sm:$0x3]
      %v1048 = vunpack.c.l.s4 1983009808
      %v1049 = vunpack.c.0.s8 %v1048
      %v1050 = vlaneseq
      %v1051 = vshrl.u32 %v1050, 7
      %v1052 = vsub.s32 %v1049, %v1051
      %v1053 = vrot.slane %v1045, %v1052
      %1054 = vrot.lane.b32.xlu0 %v1053, 48
      %v1055 = vpop.permute.xlu0 %1054
      %1057 = vst.msk [vmem:[#allocation2 + $0x4] sm:$0x3] %vm560, %v1055
      %v1058 = vcombine.low %v1045, %v1045
      %v1060 = vunpack.c.l.s4 1983009808
      %v1061 = vunpack.c.0.s8 %v1060
      %v1062 = vlaneseq
      %v1063 = vshrl.u32 %v1062, 7
      %v1064 = vsub.s32 %v1061, %v1063
      %v1065 = vrot.slane %v1058, %v1064
      %1066 = vrot.lane.b32.xlu0 %v1065, 39
      %v1067 = vpop.permute.xlu0 %1066
      %1069 = vst.msk [vmem:[#allocation2 + $0x4] sm:$0xc] %vm573, %v1067
      %1070 = vrot.lane.b32.xlu0 %v1053, 47
      %v1071 = vpop.permute.xlu0 %1070
      %1073 = vst.msk [vmem:[#allocation2 + $0xc] sm:$0x3] %vm560, %v1071
      %s1074 = scalar_lea.vmem %s353, 46
      %v1075 = vld [vmem:[%s1074] sm:$0x3]
      %v1078 = vunpack.c.l.s4 1983009808
      %v1079 = vunpack.c.0.s8 %v1078
      %v1080 = vlaneseq
      %v1081 = vshrl.u32 %v1080, 7
      %v1082 = vsub.s32 %v1079, %v1081
      %v1083 = vrot.slane %v1075, %v1082
      %1084 = vrot.lane.b32.xlu0 %v1083, 56
      %v1085 = vpop.permute.xlu0 %1084
      %1087 = vst.msk [vmem:[#allocation2 + $0x4] sm:$0x3] %vm592, %v1085
      %v1088 = vcombine.low %v1075, %v1075
      %v1090 = vunpack.c.l.s4 1983009808
      %v1091 = vunpack.c.0.s8 %v1090
      %v1092 = vlaneseq
      %v1093 = vshrl.u32 %v1092, 7
      %v1094 = vsub.s32 %v1091, %v1093
      %v1095 = vrot.slane %v1088, %v1094
      %1096 = vrot.lane.b32.xlu0 %v1095, 47
      %v1097 = vpop.permute.xlu0 %1096
      %1099 = vst.msk [vmem:[#allocation2 + $0x4] sm:$0xc] %vm605, %v1097
      %1100 = vrot.lane.b32.xlu0 %v1083, 55
      %v1101 = vpop.permute.xlu0 %1100
      %1103 = vst.msk [vmem:[#allocation2 + $0xc] sm:$0x3] %vm592, %v1101
      %s1104 = scalar_lea.vmem %s353, 48
      %v1105 = vld [vmem:[%s1104] sm:$0x3]
      %v1108 = vunpack.c.l.s4 1983009808
      %v1109 = vunpack.c.0.s8 %v1108
      %v1110 = vlaneseq
      %v1111 = vshrl.u32 %v1110, 7
      %v1112 = vsub.s32 %v1109, %v1111
      %v1113 = vrot.slane %v1105, %v1112
      %1114 = vrot.lane.b32.xlu0 %v1113, 64
      %v1115 = vpop.permute.xlu0 %1114
      %1117 = vst.msk [vmem:[#allocation2 + $0x4] sm:$0x3] %vm624, %v1115
      %v1118 = vcombine.low %v1105, %v1105
      %v1120 = vunpack.c.l.s4 1983009808
      %v1121 = vunpack.c.0.s8 %v1120
      %v1122 = vlaneseq
      %v1123 = vshrl.u32 %v1122, 7
      %v1124 = vsub.s32 %v1121, %v1123
      %v1125 = vrot.slane %v1118, %v1124
      %1126 = vrot.lane.b32.xlu0 %v1125, 55
      %v1127 = vpop.permute.xlu0 %1126
      %1129 = vst.msk [vmem:[#allocation2 + $0x4] sm:$0xc] %vm637, %v1127
      %1130 = vrot.lane.b32.xlu0 %v1113, 63
      %v1131 = vpop.permute.xlu0 %1130
      %1133 = vst.msk [vmem:[#allocation2 + $0xc] sm:$0x3] %vm624, %v1131
      %s1134 = scalar_lea.vmem %s353, 50
      %v1135 = vld [vmem:[%s1134] sm:$0x3]
      %v1138 = vunpack.c.l.s4 1983009808
      %v1139 = vunpack.c.0.s8 %v1138
      %v1140 = vlaneseq
      %v1141 = vshrl.u32 %v1140, 7
      %v1142 = vsub.s32 %v1139, %v1141
      %v1143 = vrot.slane %v1135, %v1142
      %1144 = vrot.lane.b32.xlu0 %v1143, 72
      %v1145 = vpop.permute.xlu0 %1144
      %1147 = vst.msk [vmem:[#allocation2 + $0x4] sm:$0x3] %vm656, %v1145
      %v1148 = vcombine.low %v1135, %v1135
      %v1150 = vunpack.c.l.s4 1983009808
      %v1151 = vunpack.c.0.s8 %v1150
      %v1152 = vlaneseq
      %v1153 = vshrl.u32 %v1152, 7
      %v1154 = vsub.s32 %v1151, %v1153
      %v1155 = vrot.slane %v1148, %v1154
      %1156 = vrot.lane.b32.xlu0 %v1155, 63
      %v1157 = vpop.permute.xlu0 %1156
      %1159 = vst.msk [vmem:[#allocation2 + $0x4] sm:$0xc] %vm669, %v1157
      %1160 = vrot.lane.b32.xlu0 %v1143, 71
      %v1161 = vpop.permute.xlu0 %1160
      %1163 = vst.msk [vmem:[#allocation2 + $0xc] sm:$0x3] %vm656, %v1161
      %s1164 = scalar_lea.vmem %s353, 52
      %v1165 = vld [vmem:[%s1164] sm:$0x3]
      %v1168 = vunpack.c.l.s4 1983009808
      %v1169 = vunpack.c.0.s8 %v1168
      %v1170 = vlaneseq
      %v1171 = vshrl.u32 %v1170, 7
      %v1172 = vsub.s32 %v1169, %v1171
      %v1173 = vrot.slane %v1165, %v1172
      %1174 = vrot.lane.b32.xlu0 %v1173, 80
      %v1175 = vpop.permute.xlu0 %1174
      %1177 = vst.msk [vmem:[#allocation2 + $0x4] sm:$0x3] %vm688, %v1175
      %v1178 = vcombine.low %v1165, %v1165
      %v1180 = vunpack.c.l.s4 1983009808
      %v1181 = vunpack.c.0.s8 %v1180
      %v1182 = vlaneseq
      %v1183 = vshrl.u32 %v1182, 7
      %v1184 = vsub.s32 %v1181, %v1183
      %v1185 = vrot.slane %v1178, %v1184
      %1186 = vrot.lane.b32.xlu0 %v1185, 71
      %v1187 = vpop.permute.xlu0 %1186
      %1189 = vst.msk [vmem:[#allocation2 + $0x4] sm:$0xc] %vm701, %v1187
      %1190 = vrot.lane.b32.xlu0 %v1173, 79
      %v1191 = vpop.permute.xlu0 %1190
      %1193 = vst.msk [vmem:[#allocation2 + $0xc] sm:$0x3] %vm688, %v1191
      %s1194 = scalar_lea.vmem %s353, 54
      %v1195 = vld [vmem:[%s1194] sm:$0x3]
      %v1198 = vunpack.c.l.s4 1983009808
      %v1199 = vunpack.c.0.s8 %v1198
      %v1200 = vlaneseq
      %v1201 = vshrl.u32 %v1200, 7
      %v1202 = vsub.s32 %v1199, %v1201
      %v1203 = vrot.slane %v1195, %v1202
      %1204 = vrot.lane.b32.xlu0 %v1203, 88
      %v1205 = vpop.permute.xlu0 %1204
      %1207 = vst.msk [vmem:[#allocation2 + $0x4] sm:$0x3] %vm720, %v1205
      %v1208 = vcombine.low %v1195, %v1195
      %v1210 = vunpack.c.l.s4 1983009808
      %v1211 = vunpack.c.0.s8 %v1210
      %v1212 = vlaneseq
      %v1213 = vshrl.u32 %v1212, 7
      %v1214 = vsub.s32 %v1211, %v1213
      %v1215 = vrot.slane %v1208, %v1214
      %1216 = vrot.lane.b32.xlu0 %v1215, 79
      %v1217 = vpop.permute.xlu0 %1216
      %1219 = vst.msk [vmem:[#allocation2 + $0x4] sm:$0xc] %vm733, %v1217
      %1220 = vrot.lane.b32.xlu0 %v1203, 87
      %v1221 = vpop.permute.xlu0 %1220
      %1223 = vst.msk [vmem:[#allocation2 + $0xc] sm:$0x3] %vm720, %v1221
      %s1224 = scalar_lea.vmem %s353, 56
      %v1225 = vld [vmem:[%s1224] sm:$0x3]
      %v1228 = vunpack.c.l.s4 1983009808
      %v1229 = vunpack.c.0.s8 %v1228
      %v1230 = vlaneseq
      %v1231 = vshrl.u32 %v1230, 7
      %v1232 = vsub.s32 %v1229, %v1231
      %v1233 = vrot.slane %v1225, %v1232
      %1234 = vrot.lane.b32.xlu0 %v1233, 96
      %v1235 = vpop.permute.xlu0 %1234
      %1237 = vst.msk [vmem:[#allocation2 + $0x4] sm:$0x3] %vm752, %v1235
      %v1238 = vcombine.low %v1225, %v1225
      %v1240 = vunpack.c.l.s4 1983009808
      %v1241 = vunpack.c.0.s8 %v1240
      %v1242 = vlaneseq
      %v1243 = vshrl.u32 %v1242, 7
      %v1244 = vsub.s32 %v1241, %v1243
      %v1245 = vrot.slane %v1238, %v1244
      %1246 = vrot.lane.b32.xlu0 %v1245, 87
      %v1247 = vpop.permute.xlu0 %1246
      %1249 = vst.msk [vmem:[#allocation2 + $0x4] sm:$0xc] %vm765, %v1247
      %1250 = vrot.lane.b32.xlu0 %v1233, 95
      %v1251 = vpop.permute.xlu0 %1250
      %1253 = vst.msk [vmem:[#allocation2 + $0xc] sm:$0x3] %vm752, %v1251
      %s1254 = scalar_lea.vmem %s353, 58
      %v1255 = vld [vmem:[%s1254] sm:$0x3]
      %v1258 = vunpack.c.l.s4 1983009808
      %v1259 = vunpack.c.0.s8 %v1258
      %v1260 = vlaneseq
      %v1261 = vshrl.u32 %v1260, 7
      %v1262 = vsub.s32 %v1259, %v1261
      %v1263 = vrot.slane %v1255, %v1262
      %1264 = vrot.lane.b32.xlu0 %v1263, 104
      %v1265 = vpop.permute.xlu0 %1264
      %1267 = vst.msk [vmem:[#allocation2 + $0x4] sm:$0x3] %vm784, %v1265
      %v1268 = vcombine.low %v1255, %v1255
      %v1270 = vunpack.c.l.s4 1983009808
      %v1271 = vunpack.c.0.s8 %v1270
      %v1272 = vlaneseq
      %v1273 = vshrl.u32 %v1272, 7
      %v1274 = vsub.s32 %v1271, %v1273
      %v1275 = vrot.slane %v1268, %v1274
      %1276 = vrot.lane.b32.xlu0 %v1275, 95
      %v1277 = vpop.permute.xlu0 %1276
      %1279 = vst.msk [vmem:[#allocation2 + $0x4] sm:$0xc] %vm797, %v1277
      %1280 = vrot.lane.b32.xlu0 %v1263, 103
      %v1281 = vpop.permute.xlu0 %1280
      %1283 = vst.msk [vmem:[#allocation2 + $0xc] sm:$0x3] %vm784, %v1281
      %s1284 = scalar_lea.vmem %s353, 60
      %v1285 = vld [vmem:[%s1284] sm:$0x3]
      %v1288 = vunpack.c.l.s4 1983009808
      %v1289 = vunpack.c.0.s8 %v1288
      %v1290 = vlaneseq
      %v1291 = vshrl.u32 %v1290, 7
      %v1292 = vsub.s32 %v1289, %v1291
      %v1293 = vrot.slane %v1285, %v1292
      %1294 = vrot.lane.b32.xlu0 %v1293, 112
      %v1295 = vpop.permute.xlu0 %1294
      %1297 = vst.msk [vmem:[#allocation2 + $0x4] sm:$0x3] %vm816, %v1295
      %v1298 = vcombine.low %v1285, %v1285
      %v1300 = vunpack.c.l.s4 1983009808
      %v1301 = vunpack.c.0.s8 %v1300
      %v1302 = vlaneseq
      %v1303 = vshrl.u32 %v1302, 7
      %v1304 = vsub.s32 %v1301, %v1303
      %v1305 = vrot.slane %v1298, %v1304
      %1306 = vrot.lane.b32.xlu0 %v1305, 103
      %v1307 = vpop.permute.xlu0 %1306
      %1309 = vst.msk [vmem:[#allocation2 + $0x4] sm:$0xc] %vm829, %v1307
      %1310 = vrot.lane.b32.xlu0 %v1293, 111
      %v1311 = vpop.permute.xlu0 %1310
      %1313 = vst.msk [vmem:[#allocation2 + $0xc] sm:$0x3] %vm816, %v1311
      %s1314 = scalar_lea.vmem %s353, 62
      %v1315 = vld [vmem:[%s1314] sm:$0x3]
      %v1318 = vunpack.c.l.s4 1983009808
      %v1319 = vunpack.c.0.s8 %v1318
      %v1320 = vlaneseq
      %v1321 = vshrl.u32 %v1320, 7
      %v1322 = vsub.s32 %v1319, %v1321
      %v1323 = vrot.slane %v1315, %v1322
      %1324 = vrot.lane.b32.xlu0 %v1323, 120
      %v1325 = vpop.permute.xlu0 %1324
      %1327 = vst.msk [vmem:[#allocation2 + $0x4] sm:$0x3] %vm848, %v1325
      %v1328 = vcombine.low %v1315, %v1315
      %v1330 = vunpack.c.l.s4 1983009808
      %v1331 = vunpack.c.0.s8 %v1330
      %v1332 = vlaneseq
      %v1333 = vshrl.u32 %v1332, 7
      %v1334 = vsub.s32 %v1331, %v1333
      %v1335 = vrot.slane %v1328, %v1334
      %1336 = vrot.lane.b32.xlu0 %v1335, 111
      %v1337 = vpop.permute.xlu0 %1336
      %1339 = vst.msk [vmem:[#allocation2 + $0x4] sm:$0xc] %vm861, %v1337
      %1340 = vrot.lane.b32.xlu0 %v1323, 119
      %v1341 = vpop.permute.xlu0 %1340
      %1343 = vst.msk [vmem:[#allocation2 + $0xc] sm:$0x3] %vm848, %v1341
      %v1344 = vld [vmem:[%s1] sm:$0xf]
      %v1345 = vld [vmem:[#allocation2] sm:$0xff]
      %v1346 = vld [vmem:[#allocation2 + $0x8] sm:$0x33]
      %v1347 = vld [vmem:[%s2] sm:$0xff]
      %1349 = vset.pattern.permute.xlu0 0
      %1350 = vperm.xlu0 %1349, %v1347
      %v1351 = vpop.permute.xlu0 %1350
      %v1355 = vunpack.c.l.b16 %v1345
      %v1356 = vunpack.c.h.b16 %v1345
      %v1357 = vunpack.c.l.b16 %v1346
      %v1358 = vunpack.c.h.b16 %v1346
      %v1359 = vpack.c.b16 %v1357, %v1355
      %v1360 = vpack.c.b16 %v1358, %v1356
      %vm1361 = vcmask 97280
      %v1363 = vsel %vm1361, %v1344, 0
      %vm1365 = vcmask 1045504
      %v1367 = vsel %vm1365, %v1359, 0
      %v1370 = vsel %vm1365, %v1360, 0
      %1372 = vmatprep.subr.bf16.mxu0 %v1370
      %1373 = vmatpush1.bf16.msra.mxu0 %v1367
      %1374 = vmatprep.subr.bf16.mxu0 0
      %1375 = vmatpush1.bf16.msra.mxu0 0
      %1376 = vmatprep.subr.bf16.mxu0 0
      %1377 = vmatpush1.bf16.msra.mxu0 0
      %1378 = vmatprep.subr.bf16.mxu0 0
      %1379 = vmatpush1.bf16.msra.mxu0 0
      %1380 = vmatprep.subr.bf16.mxu0 0
      %1381 = vmatpush1.bf16.msra.mxu0 0
      %1382 = vmatprep.subr.bf16.mxu0 0
      %1383 = vmatpush1.bf16.msra.mxu0 0
      %1384 = vmatprep.subr.bf16.mxu0 0
      %1385 = vmatpush1.bf16.msra.mxu0 0
      %1386 = vmatprep.subr.bf16.mxu0 0
      %1387 = vmatpush1.bf16.msra.mxu0 0
      %1388 = vmatprep.subr.bf16.mxu0 0
      %1389 = vmatpush1.bf16.msra.mxu0 0
      %1390 = vmatprep.subr.bf16.mxu0 0
      %1391 = vmatpush1.bf16.msra.mxu0 0
      %1392 = vmatprep.subr.bf16.mxu0 0
      %1393 = vmatpush1.bf16.msra.mxu0 0
      %1394 = vmatprep.subr.bf16.mxu0 0
      %1395 = vmatpush1.bf16.msra.mxu0 0
      %1396 = vmatprep.subr.bf16.mxu0 0
      %1397 = vmatpush1.bf16.msra.mxu0 0
      %1398 = vmatprep.subr.bf16.mxu0 0
      %1399 = vmatpush1.bf16.msra.mxu0 0
      %1400 = vmatprep.subr.bf16.mxu0 0
      %1401 = vmatpush1.bf16.msra.mxu0 0
      %1402 = vmatprep.subr.bf16.mxu0 0
      %1403 = vmatpush1.bf16.msra.mxu0 0
      %1404 = vmatprep.mubr.bf16.mxu0 0
      %1405 = vmatmul.mubr.bf16.gmra.mrb[0].mxu0 %v1363
      %v1406 = vpop.f32.mrb[0].mxu0
      %v1407 = vadd.f32 %v1351, %v1406
      %v1408 = vpop.f32.mrb[0].mxu0
      %v1409 = vadd.f32 %v1351, %v1408
      %v1410 = vpop.f32.mrb[0].mxu0
      %v1411 = vpop.f32.mrb[0].mxu0
      %1412 = vdwg.mxu0
      %v1413 = vld [vmem:[%s5] sm:$0x3]
      %v1415 = vlaneseq
      %v1416 = vshrl.u32 %v1415, 7
      %v1417 = vsub.s32 0, %v1416
      %v1418 = vrot.slane %v1413, %v1417
      %v1419 = vlaneseq
      %v1420 = vshrl.u32 %v1419, 7
      %v1421 = vsub.s32 1, %v1420
      %v1422 = vrot.slane %v1413, %v1421
      %v1425 = vmul.f32 %v1407, %v1418
      %v1426 = vmul.f32 %v1409, %v1422
      %v1427 = vadd.f32 %v1425, %v1426
      %1428 = vadd.xlane.f32.xlu0 %v1427
      %v1429 = vpop.xlane.xlu0 %1428
      %v1430 = vrot.slane %v1429, 4
      %v1431 = vadd.f32 %v1429, %v1430
      %v1432 = vrot.slane %v1431, 2
      %v1433 = vadd.f32 %v1431, %v1432
      %v1434 = vrot.slane %v1433, 1
      %v1435 = vadd.f32 %v1433, %v1434
      %s1436 = vtos %v1435
      %s1437 = smul.f32 %s1436, 0.0009765625
      %v1438 = vmul.f32 %v1425, %v1407
      %v1439 = vmul.f32 %v1426, %v1409
      %v1440 = vadd.f32 %v1438, %v1439
      %1441 = vadd.xlane.f32.xlu0 %v1440
      %v1442 = vpop.xlane.xlu0 %1441
      %v1443 = vrot.slane %v1442, 4
      %v1444 = vadd.f32 %v1442, %v1443
      %v1445 = vrot.slane %v1444, 2
      %v1446 = vadd.f32 %v1444, %v1445
      %v1447 = vrot.slane %v1446, 1
      %v1448 = vadd.f32 %v1446, %v1447
      %s1449 = vtos %v1448
      %s1450 = smul.f32 %s1449, 0.0009765625
      %s1451 = smul.f32 %s1437, %s1437
      %s1452 = ssub.f32 %s1450, %s1451
      %s1453 = sadd.f32 %s1452, 1e-05
      %v1454 = vstv %s1453
      %v1455 = vrsqrt.pop %v1454
      %s1456 = vtos %v1455
      %v1457 = vstv %s1437
      %v1458 = vsub.f32 %v1407, %v1457
      %v1459 = vsub.f32 %v1409, %v1457
      %v1460 = vstv %s1456
      %v1461 = vmul.f32 %v1458, %v1460
      %v1462 = vmul.f32 %v1459, %v1460
      %v1463 = vld [vmem:[%s3] sm:$0xff]
      %v1464 = vunpack.c.l.bf16 %v1463
      %v1465 = vunpack.c.h.bf16 %v1463
      %v1466 = vmul.f32 %v1461, %v1464
      %v1467 = vmul.f32 %v1462, %v1465
      %v1468 = vld [vmem:[%s4] sm:$0xff]
      %v1469 = vunpack.c.l.bf16 %v1468
      %v1470 = vunpack.c.h.bf16 %v1468
      %v1471 = vadd.f32 %v1466, %v1469
      %v1472 = vadd.f32 %v1467, %v1470
      %v1473 = vmax.f32 %v1471, 0.0
      %v1474 = vmax.f32 %v1472, 0.0
      %1475 = vst [vmem:[#allocation3] sm:$0xff] %v1473
      %1476 = vst [vmem:[#allocation3 + $0x8] sm:$0xff] %v1474
      %v1477 = vld [vmem:[#allocation3] sm:$0xff]
      %1478 = vst [vmem:[#allocation4] sm:$0xff] %v1477
      %v1479 = vld [vmem:[#allocation3 + $0x8] sm:$0xff]
      %1480 = vst [vmem:[#allocation4 + $0x8] sm:$0xff] %v1479
      %v1481 = vld [vmem:[#allocation3] sm:$0xff]
      %v1482 = vld [vmem:[#allocation3 + $0x8] sm:$0xff]
      %1485 = vrot.lane.b32.xlu0 %v1481, 120
      %v1486 = vpop.permute.xlu0 %1485
      %1487 = vrot.lane.b32.xlu0 %v1482, 120
      %v1488 = vpop.permute.xlu0 %1487
      %vm1489 = vcmask 982016
      %v1490 = vsel %vm1489, %v1486, %v1488
      %1492 = vst [vmem:[#allocation4 + $0x10] sm:$0xff] %v1490
      %v1493 = vld [vmem:[%s6] sm:$0xff]
      %v1494 = vld [vmem:[#allocation4] sm:$0xff]
      %v1495 = vld [vmem:[#allocation4 + $0x8] sm:$0xff]
      %v1496 = vld [vmem:[#allocation4 + $0x10] sm:$0xff]
      %v1497 = vld [vmem:[%s7] sm:$0xff]
      %1499 = vset.pattern.permute.xlu0 0
      %1500 = vperm.xlu0 %1499, %v1497
      %v1501 = vpop.permute.xlu0 %1500
      %vm1503 = vcmask 195584
      %v1505 = vsel %vm1503, %v1493, 0
      %1507 = vmatprep.subr.mxu0 0.0
      %1508 = vmatpush1.msra.mxu0 %v1494
      %1509 = vmatprep.subr.mxu0 0.0
      %1510 = vmatpush1.msra.mxu0 %v1495
      %1511 = vmatprep.subr.mxu0 0.0
      %1512 = vmatpush1.msra.mxu0 %v1496
      %1513 = vmatprep.subr.mxu0 0.0
      %1514 = vmatpush1.msra.mxu0 0.0
      %1515 = vmatprep.subr.mxu0 0.0
      %1516 = vmatpush1.msra.mxu0 0.0
      %1517 = vmatprep.subr.mxu0 0.0
      %1518 = vmatpush1.msra.mxu0 0.0
      %1519 = vmatprep.subr.mxu0 0.0
      %1520 = vmatpush1.msra.mxu0 0.0
      %1521 = vmatprep.subr.mxu0 0.0
      %1522 = vmatpush1.msra.mxu0 0.0
      %1523 = vmatprep.subr.mxu0 0.0
      %1524 = vmatpush1.msra.mxu0 0.0
      %1525 = vmatprep.subr.mxu0 0.0
      %1526 = vmatpush1.msra.mxu0 0.0
      %1527 = vmatprep.subr.mxu0 0.0
      %1528 = vmatpush1.msra.mxu0 0.0
      %1529 = vmatprep.subr.mxu0 0.0
      %1530 = vmatpush1.msra.mxu0 0.0
      %1531 = vmatprep.subr.mxu0 0.0
      %1532 = vmatpush1.msra.mxu0 0.0
      %1533 = vmatprep.subr.mxu0 0.0
      %1534 = vmatpush1.msra.mxu0 0.0
      %1535 = vmatprep.subr.mxu0 0.0
      %1536 = vmatpush1.msra.mxu0 0.0
      %1537 = vmatprep.subr.mxu0 0.0
      %1538 = vmatpush1.msra.mxu0 0.0
      %1539 = vmatprep.subr.mxu0 0.0
      %1540 = vmatpush1.msra.mxu0 0.0
      %1541 = vmatprep.subr.mxu0 0.0
      %1542 = vmatpush1.msra.mxu0 0.0
      %1543 = vmatprep.subr.mxu0 0.0
      %1544 = vmatpush1.msra.mxu0 0.0
      %1545 = vmatprep.subr.mxu0 0.0
      %1546 = vmatpush1.msra.mxu0 0.0
      %1547 = vmatprep.subr.mxu0 0.0
      %1548 = vmatpush1.msra.mxu0 0.0
      %1549 = vmatprep.subr.mxu0 0.0
      %1550 = vmatpush1.msra.mxu0 0.0
      %1551 = vmatprep.subr.mxu0 0.0
      %1552 = vmatpush1.msra.mxu0 0.0
      %1553 = vmatprep.subr.mxu0 0.0
      %1554 = vmatpush1.msra.mxu0 0.0
      %1555 = vmatprep.subr.mxu0 0.0
      %1556 = vmatpush1.msra.mxu0 0.0
      %1557 = vmatprep.subr.mxu0 0.0
      %1558 = vmatpush1.msra.mxu0 0.0
      %1559 = vmatprep.subr.mxu0 0.0
      %1560 = vmatpush1.msra.mxu0 0.0
      %1561 = vmatprep.subr.mxu0 0.0
      %1562 = vmatpush1.msra.mxu0 0.0
      %1563 = vmatprep.subr.mxu0 0.0
      %1564 = vmatpush1.msra.mxu0 0.0
      %1565 = vmatprep.subr.mxu0 0.0
      %1566 = vmatpush1.msra.mxu0 0.0
      %1567 = vmatprep.subr.mxu0 0.0
      %1568 = vmatpush1.msra.mxu0 0.0
      %1569 = vmatprep.subr.mxu0 0.0
      %1570 = vmatpush1.msra.mxu0 0.0
      %1571 = vmatprep.mubr.f32.mxu0 0.0
      %1572 = vmatmul.mubr.f32.gmra.mrb[0].mxu0 %v1505
      %v1573 = vpop.f32.mrb[0].mxu0
      %v1574 = vadd.f32 %v1501, %v1573
      %v1575 = vpop.f32.mrb[0].mxu0
      %1576 = vdwg.mxu0
      %vm1577 = vcmask 523264
      %v1578 = vsel %vm1577, %v1574, 0.0
      %1579 = vadd.xlane.f32.xlu0 %v1578
      %v1580 = vpop.xlane.xlu0 %1579
      %v1581 = vrot.slane %v1580, 4
      %v1582 = vadd.f32 %v1580, %v1581
      %v1583 = vrot.slane %v1582, 2
      %v1584 = vadd.f32 %v1582, %v1583
      %v1585 = vrot.slane %v1584, 1
      %v1586 = vadd.f32 %v1584, %v1585
      %s1587 = vtos %v1586
      %s1588 = smul.f32 %s1587, 0.001953125
      %v1589 = vmul.f32 %v1574, %v1574
      %v1590 = vsel %vm1577, %v1589, 0.0
      %1591 = vadd.xlane.f32.xlu0 %v1590
      %v1592 = vpop.xlane.xlu0 %1591
      %v1593 = vrot.slane %v1592, 4
      %v1594 = vadd.f32 %v1592, %v1593
      %v1595 = vrot.slane %v1594, 2
      %v1596 = vadd.f32 %v1594, %v1595
      %v1597 = vrot.slane %v1596, 1
      %v1598 = vadd.f32 %v1596, %v1597
      %s1599 = vtos %v1598
      %s1600 = smul.f32 %s1599, 0.001953125
      %s1601 = smul.f32 %s1588, %s1588
      %s1602 = ssub.f32 %s1600, %s1601
      %s1603 = sadd.f32 %s1602, 1e-05
      %v1604 = vstv %s1603
      %v1605 = vrsqrt.pop %v1604
      %s1606 = vtos %v1605
      %v1607 = vstv %s1588
      %v1608 = vsub.f32 %v1574, %v1607
      %v1609 = vstv %s1606
      %v1610 = vmul.f32 %v1608, %v1609
      %v1611 = vld [vmem:[%s8] sm:$0xf]
      %v1612 = vunpack.c.l.bf16 %v1611
      %v1613 = vmul.f32 %v1610, %v1612
      %v1614 = vld [vmem:[%s9] sm:$0xf]
      %v1615 = vunpack.c.l.bf16 %v1614
      %v1616 = vadd.f32 %v1613, %v1615
      %v1617 = vmax.f32 %v1616, 0.0
      %1618 = vst [vmem:[%s357] sm:$0xff] %v1617
      %p1619 = scmp.lt.s32.totalorder %s21, 1
      %s1620 = scalar_select %p1619, %s21, 1
      %s1621 = smul.addr %s1620, 8
      %s1622 = scalar_lea.vmem %s10, %s1621
      // Predicated region
      $region61: #{spatially_separable_conv_block.1} parent=59 // pred_check
        %p1623 = pneg %p254
      $region62: #{spatially_separable_conv_block.1} parent=59 // pred_check_branch
        %1625 = sbr.rel (%p1623) target = $region64
      $region63: #{spatially_separable_conv_block.1} parent=59 // pred_region
        _
      $region64: #{spatially_separable_conv_block.1} parent=59 // pred_fallthru
        _
    $region60: #{spatially_separable_conv_block.1} parent=5 // pred_fallthru
      _
    %p1626 = scmp.le.s32.totalorder 2, %s16
    // Predicated region
    $region65: #{spatially_separable_conv_block.1} parent=5 // pred_check
      %p1627 = pneg %p1626
    $region66: #{spatially_separable_conv_block.1} parent=5 // pred_check_branch
      %1629 = sbr.rel (%p1627) target = $region68
    $region67: #{spatially_separable_conv_block.1} parent=5 // pred_region
      %s1630 = ssub.s32 %s16, 2
      // Predicated region
      $region69: #{spatially_separable_conv_block.1} parent=67 // pred_check
        %p1631 = pneg %p260
      $region70: #{spatially_separable_conv_block.1} parent=67 // pred_check_branch
        %1633 = sbr.rel (%p1631) target = $region72
      $region71: #{spatially_separable_conv_block.1} parent=67 // pred_region
        %p1634 = scmp.lt.s32.totalorder %s22, 1
        %s1635 = scalar_select %p1634, %s22, 1
        %s1636 = smul.addr %s1635, 8
        %s1637 = scalar_lea.vmem %s10, %s1636
      $region72: #{spatially_separable_conv_block.1} parent=67 // pred_fallthru
        _
    $region68: #{spatially_separable_conv_block.1} parent=5 // pred_fallthru
      _
  $region6: #{spatially_separable_conv_block.1} parent=0 // loop_footer
    %s20 = sadd.s32 1, %s16
  $region7: #{spatially_separable_conv_block.1} parent=0 // loop_footer_branch
    %15 = sbr.rel target = $region3
  $region8: #{spatially_separable_conv_block.1} parent=0 // loop_exit
    _

</llo_original>
